<compile_context>
chip_gen: v7x
topology: tpu7x:2x2x1
jax: 0.10.0
libtpu: 0.0.40
codegen_flags: <defaults>
</compile_context>

<pallas_src>
import math
import functools

import jax
import jax.numpy as jnp
from jax.experimental import pallas as pl
from jax.experimental.pallas import tpu as pltpu

PAD = 0
_MIB = 1 << 20


def _round_up(n, m):
    return ((n + m - 1) // m) * m


def _pad_rows(x, n_pad):
    n = x.shape[0]
    if n_pad != n:
        x = jnp.pad(x, ((0, n_pad - n),) + ((0, 0),) * (x.ndim - 1))
    return x


# ----------------------------------------------------------------------------
# GRU kernel.  grid = (batch_blocks ["parallel"], time_blocks ["arbitrary"]).
# Hidden state carried in the resident hn output block.  Input projection for a
# whole ts-step block is one fused (ts*tb, E) x (E, 3H) matmul.
# ----------------------------------------------------------------------------
def _gru_kernel(x_ref, h0_ref, steps_ref, wi_ref, wh_ref, bi_ref, bh_ref,
                out_ref, hn_ref, gi_scr, *, ts, tb):
    s = pl.program_id(1)                       # time-block index (inner, "arbitrary")
    H = hn_ref.shape[-1]

    @pl.when(s == 0)
    def _():
        hn_ref[...] = h0_ref[...]

    # Hoisted input projection: one MXU call for all ts steps (M = ts*tb),
    # r|z|n gates fused into a single 3H-wide result.
    x_blk = x_ref[...].reshape(ts * tb, x_ref.shape[-1])            # bf16 (ts*tb, E)
    gi_scr[...] = jnp.dot(x_blk, wi_ref[...],
                          preferred_element_type=jnp.float32) + bi_ref[...]

    # Loop-invariant reads hoisted out of the recurrence.
    wh = wh_ref[...]                                                # (H, 3H) bf16
    bh = bh_ref[...]                                                # (1, 3H) f32
    steps = steps_ref[...]                                          # (tb, 1) int32
    base = s * ts

    def step(t, h):
        i = pl.multiple_of(t * tb, tb)                              # sublane-aligned (tb % 8 == 0)
        gi = gi_scr[pl.ds(i, tb), :]                                # (tb, 3H) f32
        gh = jnp.dot(h.astype(jnp.bfloat16), wh,
                     preferred_element_type=jnp.float32) + bh
        r = jax.nn.sigmoid(gi[:, :H] + gh[:, :H])
        z = jax.nn.sigmoid(gi[:, H:2 * H] + gh[:, H:2 * H])
        n = jnp.tanh(gi[:, 2 * H:] + r * gh[:, 2 * H:])
        h_new = (1.0 - z) * n + z * h
        # One (tb,1) compare per step; hoisting it would need a dynamic slice of a
        # precomputed (ts,tb,1) mask, which costs about the same.
        valid = steps > (base + t)
        out_ref[t] = jnp.where(valid, h_new, 0.0).astype(out_ref.dtype)  # padded output = 0
        return jnp.where(valid, h_new, h)                            # freeze hidden past the end

    hn_ref[...] = jax.lax.fori_loop(0, ts, step, hn_ref[...], unroll=True)


def _gru_vmem_bytes(ts, tb, E, H):
    stream = 2 * ts * tb * E * 2 + 2 * ts * tb * H * 2   # bf16 x / out blocks, double-buffered
    scratch = ts * tb * 3 * H * 4                        # gi_scr, f32, single-buffered
    weights = 2 * ((E * 3 * H + H * 3 * H) * 2 + 2 * 3 * H * 4)
    small = 2 * (2 * tb * H * 4 + tb * 4)
    return stream + scratch + weights + small


def gru_forward(emb_tm, h0, steps, wi, wh, bi, bh, ts=None,
                vmem_budget_bytes=24 * _MIB):
    """emb_tm: (T-1, B, E) bf16 time-major -> (out (T-1,B,H) bf16, hn (B,H) f32)."""
    Tm1, B, E = emb_tm.shape
    H = h0.shape[-1]
    Bp = _round_up(B, 8)
    # Two batch blocks when possible so the "parallel" axis can shard across v7x's 2 TCs.
    tb = Bp // 2 if (Bp >= 16 and Bp % 16 == 0) else Bp
    nb = Bp // tb

    if ts is None:
        for ts in (64, 32, 16, 8):                       # largest time block fitting the budget
            if _gru_vmem_bytes(ts, tb, E, H) <= vmem_budget_bytes:
                break
    ts = min(ts, _round_up(Tm1, 8))
    n_t = pl.cdiv(Tm1, ts)
    Tp = n_t * ts

    emb_tm = jnp.pad(emb_tm, ((0, Tp - Tm1), (0, Bp - B), (0, 0)))
    h0 = jnp.pad(h0, ((0, Bp - B), (0, 0)))
    steps = jnp.pad(steps, ((0, Bp - B), (0, 0)))        # padded batch rows: steps=0 -> never valid

    vmem_limit = min(max(_gru_vmem_bytes(ts, tb, E, H) + 4 * _MIB, 32 * _MIB), 64 * _MIB)
    kernel = functools.partial(_gru_kernel, ts=ts, tb=tb)
    grid_spec = pltpu.PrefetchScalarGridSpec(
        num_scalar_prefetch=0,
        grid=(nb, n_t),
        in_specs=[
            pl.BlockSpec((ts, tb, E), lambda b, s: (s, b, 0)),
            pl.BlockSpec((tb, H), lambda b, s: (b, 0)),
            pl.BlockSpec((tb, 1), lambda b, s: (b, 0)),
            pl.BlockSpec((E, 3 * H), lambda b, s: (0, 0)),
            pl.BlockSpec((H, 3 * H), lambda b, s: (0, 0)),
            pl.BlockSpec((1, 3 * H), lambda b, s: (0, 0)),
            pl.BlockSpec((1, 3 * H), lambda b, s: (0, 0)),
        ],
        out_specs=[
            pl.BlockSpec((ts, tb, H), lambda b, s: (s, b, 0)),
            pl.BlockSpec((tb, H), lambda b, s: (b, 0)),   # resident: carries hidden state over time
        ],
        scratch_shapes=[pltpu.VMEM((ts * tb, 3 * H), jnp.float32)],
    )
    out, hn = pl.pallas_call(
        kernel,
        out_shape=(jax.ShapeDtypeStruct((Tp, Bp, H), jnp.bfloat16),
                   jax.ShapeDtypeStruct((Bp, H), jnp.float32)),
        grid_spec=grid_spec,
        compiler_params=pltpu.CompilerParams(
            dimension_semantics=("parallel", "arbitrary"),
            vmem_limit_bytes=vmem_limit),
    )(emb_tm, h0, steps, wi, wh, bi, bh)
    return out[:Tm1, :B], hn[:B]


# ----------------------------------------------------------------------------
# Adaptive log-softmax kernels.  Rows tiled over the grid; weights resident.
# All weight column widths are padded to multiples of 128 at build time (with a
# -1e30 column bias) so every store is a lane-dense full-width tile.
# ----------------------------------------------------------------------------
def _log_softmax(x):
    m = jnp.max(x, axis=-1, keepdims=True)
    s = x - m
    return s - jnp.log(jnp.sum(jnp.exp(s), axis=-1, keepdims=True))


def _make_logprob_kernel(c0, nc):
    def kernel(h_ref, w_head_ref, head_bias_ref, *refs):
        tail = refs[:3 * nc]
        out_head_ref = refs[3 * nc]
        out_cl_refs = refs[3 * nc + 1:3 * nc + 1 + nc]
        h = h_ref[...].astype(jnp.bfloat16)                            # (tn, H)
        head = jnp.dot(h, w_head_ref[...],
                       preferred_element_type=jnp.float32) + head_bias_ref[...]
        head_lp = _log_softmax(head)                                   # (tn, head_szp)
        out_head_ref[...] = head_lp                                    # lane-dense full-tile store
        # TODO(synk): column-block very wide tail clusters with an online log-softmax
        # for production vocabularies (demo clusters fit one 128-lane tile).
        for j in range(nc):
            wp, wo, cb = tail[3 * j][...], tail[3 * j + 1][...], tail[3 * j + 2][...]
            proj = jnp.dot(h, wp, preferred_element_type=jnp.float32)
            logits = jnp.dot(proj.astype(jnp.bfloat16), wo,
                             preferred_element_type=jnp.float32) + cb
            out_cl_refs[j][...] = _log_softmax(logits) + head_lp[:, c0 + j:c0 + j + 1]
    return kernel


def _make_nll_kernel(c0, cluster_ranges):
    nc = len(cluster_ranges)

    def kernel(h_ref, tgt_ref, w_head_ref, head_bias_ref, *refs):
        tail = refs[:3 * nc]
        nll_ref = refs[3 * nc]
        h = h_ref[...].astype(jnp.bfloat16)                            # (tn, H)
        tgt = tgt_ref[...]                                             # (tn, 1) int32

        head = jnp.dot(h, w_head_ref[...],
                       preferred_element_type=jnp.float32) + head_bias_ref[...]
        head_lp = _log_softmax(head)
        col = jax.lax.broadcasted_iota(jnp.int32, head_lp.shape, 1)
        g_head = jnp.sum(jnp.where(col == tgt, head_lp, 0.0), axis=-1, keepdims=True)
        logp = jnp.where(tgt < c0, g_head, 0.0)
        # TODO(synk): bucket rows by target cluster (scalar-prefetch, MoE-style index_map)
        # so each tail matmul only sees its own rows; dense version runs every row
        # through every cluster.
        for j, (lo, hi) in enumerate(cluster_ranges):
            wp, wo, cb = tail[3 * j][...], tail[3 * j + 1][...], tail[3 * j + 2][...]
            proj = jnp.dot(h, wp, preferred_element_type=jnp.float32)
            logits = jnp.dot(proj.astype(jnp.bfloat16), wo,
                             preferred_element_type=jnp.float32) + cb
            cl_lp = _log_softmax(logits) + head_lp[:, c0 + j:c0 + j + 1]
            colc = jax.lax.broadcasted_iota(jnp.int32, cl_lp.shape, 1)
            g_cl = jnp.sum(jnp.where(colc == (tgt - lo), cl_lp, 0.0),
                           axis=-1, keepdims=True)
            in_cl = jnp.logical_and(tgt >= lo, tgt < hi)
            logp = jnp.where(in_cl, g_cl, logp)
        nll_ref[...] = -logp

    return kernel


def _decoder_weight_specs(dec):
    """Resident decoder weights (constant index_map) + their BlockSpecs."""
    flat = [dec['w_head'], dec['head_bias']]
    specs = [pl.BlockSpec(dec['w_head'].shape, lambda i: (0, 0)),
             pl.BlockSpec(dec['head_bias'].shape, lambda i: (0, 0))]
    for wp, wo, cb in dec['tails']:
        flat += [wp, wo, cb]
        specs += [pl.BlockSpec(wp.shape, lambda i: (0, 0)),
                  pl.BlockSpec(wo.shape, lambda i: (0, 0)),
                  pl.BlockSpec(cb.shape, lambda i: (0, 0))]
    return flat, specs


def _dec_vmem_bytes(tn, H, dec, with_logprob_out):
    head_szp = dec['head_bias'].shape[-1]
    widths = [head_szp] + [cb.shape[-1] for _, _, cb in dec['tails']]
    # double-buffered row tiles + targets/nll
    io = 2 * tn * H * 2 + 2 * tn * 4
    # resident weights still get 2 VMEM buffers by default -> include the 2x
    w = 2 * (int(dec['w_head'].size) * 2 + int(dec['head_bias'].size) * 4)
    for wp, wo, cb in dec['tails']:
        w += 2 * ((int(wp.size) + int(wo.size)) * 2 + int(cb.size) * 4)
    if with_logprob_out:
        io += sum(2 * tn * wd * 4 for wd in widths)
    inter = 4 * tn * max(widths) * 4
    return io + w + inter


def adaptive_log_prob(h_flat, dec, tn=128):
    """Full (N, V) log-probs (output_probs path)."""
    N, H = h_flat.shape
    nc = len(dec['tails'])
    c0 = dec['c0']
    csizes = [hi - lo for lo, hi in dec['cluster_ranges']]
    head_szp = dec['head_bias'].shape[-1]
    cszps = [cb.shape[-1] for _, _, cb in dec['tails']]

    tn = min(tn, _round_up(N, 8))
    n_blocks = pl.cdiv(N, tn)
    Np = n_blocks * tn
    h_pad = _pad_rows(h_flat, Np)

    flat_w, w_specs = _decoder_weight_specs(dec)
    in_specs = [pl.BlockSpec((tn, H), lambda i: (i, 0))] + w_specs
    out_shape = tuple([jax.ShapeDtypeStruct((Np, head_szp), jnp.float32)] +
                      [jax.ShapeDtypeStruct((Np, w), jnp.float32) for w in cszps])
    out_specs = ([pl.BlockSpec((tn, head_szp), lambda i: (i, 0))] +
                 [pl.BlockSpec((tn, w), lambda i: (i, 0)) for w in cszps])
    vmem_limit = min(max(_dec_vmem_bytes(tn, H, dec, True) + 4 * _MIB, 32 * _MIB), 64 * _MIB)

    outs = pl.pallas_call(
        _make_logprob_kernel(c0, nc),
        out_shape=out_shape,
        grid=(n_blocks,),
        in_specs=in_specs,
        out_specs=out_specs,
        compiler_params=pltpu.CompilerParams(
            dimension_semantics=("parallel",),         # shards row tiles across v7x's 2 TCs
            vmem_limit_bytes=vmem_limit),
    )(h_pad, *flat_w)

    # Re-assemble the real vocab layout (drops the 128-lane alignment padding).
    parts = [outs[0][:N, :c0]] + [outs[1 + j][:N, :csizes[j]] for j in range(nc)]
    return jnp.concatenate(parts, axis=-1)


def adaptive_nll(h_flat, targets, dec, tn=128):
    """Loss path: per-row -log p(target) without materializing the (N, V) matrix."""
    N, H = h_flat.shape
    tn = min(tn, _round_up(N, 8))
    n_blocks = pl.cdiv(N, tn)
    Np = n_blocks * tn
    h_pad = _pad_rows(h_flat, Np)
    t_pad = _pad_rows(targets.reshape(N, 1).astype(jnp.int32), Np)

    flat_w, w_specs = _decoder_weight_specs(dec)
    in_specs = [pl.BlockSpec((tn, H), lambda i: (i, 0)),
                pl.BlockSpec((tn, 1), lambda i: (i, 0))] + w_specs
    vmem_limit = min(max(_dec_vmem_bytes(tn, H, dec, False) + 4 * _MIB, 32 * _MIB), 64 * _MIB)

    out = pl.pallas_call(
        _make_nll_kernel(dec['c0'], dec['cluster_ranges']),
        out_shape=jax.ShapeDtypeStruct((Np, 1), jnp.float32),
        grid=(n_blocks,),
        in_specs=in_specs,
        out_specs=pl.BlockSpec((tn, 1), lambda i: (i, 0)),
        compiler_params=pltpu.CompilerParams(
            dimension_semantics=("parallel",),
            vmem_limit_bytes=vmem_limit),
    )(h_pad, t_pad, *flat_w)
    return out[:N, 0]


# ----------------------------------------------------------------------------
# Parameter construction (mirrors the PyTorch shapes & init style).
# Matmul weights stored transposed in bf16; decoder column widths padded to 128.
# ----------------------------------------------------------------------------
def build_params(key, vocab_sz, emb_sz, hidden_sz, cutoffs):
    ks = jax.random.split(key, 8)

    def xavier(k, fan_in, fan_out, shape):
        lim = math.sqrt(6.0 / (fan_in + fan_out))
        return jax.random.uniform(k, shape, jnp.float32, -lim, lim)

    # Embedding (padding_idx = PAD row zeroed); stored bf16 so the GRU activation
    # stream is half-width end to end.
    emb = jax.random.normal(ks[0], (vocab_sz, emb_sz), jnp.float32)
    emb = emb.at[PAD].set(0.0).astype(jnp.bfloat16)

    # GRU weight_ih_l0 (3H, E) xavier -> fused transposed (E, 3H), gate order r|z|n.
    w_ih = xavier(ks[1], emb_sz, 3 * hidden_sz, (3 * hidden_sz, emb_sz))
    wi = w_ih.T.astype(jnp.bfloat16)
    # GRU weight_hh_l0 (3H, H) orthogonal -> fused transposed (H, 3H).
    q, _ = jnp.linalg.qr(jax.random.normal(ks[2], (3 * hidden_sz, hidden_sz), jnp.float32))
    wh = q.T.astype(jnp.bfloat16)
    bi = jnp.zeros((1, 3 * hidden_sz), jnp.float32)
    bh = jnp.zeros((1, 3 * hidden_sz), jnp.float32)

    # AdaptiveLogSoftmaxWithLoss geometry (same formulas as the PyTorch module).
    _cluster_sz = 5
    div_val = math.log(hidden_sz / _cluster_sz, len(cutoffs) + 1)
    div_val = min(4.0, math.floor(div_val * 10) / 10)
    n_clusters = len(cutoffs)
    c0 = cutoffs[0]
    head_sz = c0 + n_clusters
    head_szp = _round_up(head_sz, 128)                       # lane-aligned head width
    w_head = xavier(ks[3], hidden_sz, head_sz, (hidden_sz, head_sz))
    w_head_p = jnp.zeros((hidden_sz, head_szp), jnp.float32).at[:, :head_sz].set(w_head)
    w_head_p = w_head_p.astype(jnp.bfloat16)
    head_bias = jnp.where(jnp.arange(head_szp) < head_sz, 0.0, -1e30)
    head_bias = head_bias.reshape(1, head_szp).astype(jnp.float32)

    cut_full = list(cutoffs) + [vocab_sz]
    cluster_ranges = [(cut_full[i], cut_full[i + 1]) for i in range(n_clusters)]
    tails = []
    tk = jax.random.split(ks[4], 2 * n_clusters)
    for i in range(n_clusters):
        hsz_i = int(hidden_sz // (div_val ** (i + 1)))
        csz_i = cut_full[i + 1] - cut_full[i]
        cszp_i = _round_up(csz_i, 128)                       # lane-aligned cluster width
        wp = xavier(tk[2 * i], hidden_sz, hsz_i, (hidden_sz, hsz_i)).astype(jnp.bfloat16)
        wo = xavier(tk[2 * i + 1], hsz_i, csz_i, (hsz_i, csz_i))
        wo_p = jnp.zeros((hsz_i, cszp_i), jnp.float32).at[:, :csz_i].set(wo).astype(jnp.bfloat16)
        cb = jnp.where(jnp.arange(cszp_i) < csz_i, 0.0, -1e30)
        cb = cb.reshape(1, cszp_i).astype(jnp.float32)
        tails.append((wp, wo_p, cb))

    dec = dict(w_head=w_head_p, head_bias=head_bias, tails=tails,
               c0=c0, cluster_ranges=cluster_ranges)
    return dict(emb=emb, wi=wi, wh=wh, bi=bi, bh=bh, dec=dec)


# ----------------------------------------------------------------------------
# Forward pass (embedding gather / reshapes as XLA glue, hot paths in Pallas).
# ----------------------------------------------------------------------------
def base_lm_forward(params, x, lengths, hidden, vocab_sz, output_probs=False,
                    mask_padded_loss=False):
    b, T = x.shape
    h0 = hidden[0]                                             # rnn_layers == 1

    # Embedding lookup (gather) + dropout kept as glue.
    # TODO(synk): dropout is identity here (eval mode / p=0); stochastic dropout not emitted.
    inputs = jnp.take(params['emb'], x, axis=0)                # (B, T, E) bf16
    emb_tm = jnp.transpose(inputs[:, :T - 1, :], (1, 0, 2))    # (T-1, B, E)
    steps = (lengths - 1).astype(jnp.int32).reshape(b, 1)

    out_tm, hn = gru_forward(emb_tm, h0, steps,
                             params['wi'], params['wh'], params['bi'], params['bh'])
    hn_out = hn[None]                                          # (rnn_layers=1, B, H)

    if output_probs:
        # Only the log-prob path needs the reference's batch-major .view() layout.
        output_flat = jnp.transpose(out_tm, (1, 0, 2)).reshape(b * (T - 1), -1)
        lp = adaptive_log_prob(output_flat, params['dec'])
        return lp.reshape(b, T - 1, vocab_sz), hn_out

    # Loss path: keep activations time-major (skips a (T-1,B,H) HBM transpose); the mean
    # over all B*(T-1) rows is order-invariant, so only the int32 targets are reordered.
    output_flat = out_tm.reshape((T - 1) * b, -1)
    targets = jnp.transpose(x[:, 1:]).reshape(-1)              # time-major targets
    nll = adaptive_nll(output_flat, targets, params['dec'])
    if mask_padded_loss:
        # Optional deviation: average only over the sum(lengths-1) valid positions.
        valid = (jnp.arange(T - 1)[:, None] < (lengths - 1)[None, :]).reshape(-1)
        valid = valid.astype(jnp.float32)
        loss = jnp.sum(nll * valid) / jnp.maximum(jnp.sum(valid), 1.0)
    else:
        # Matches nn.AdaptiveLogSoftmaxWithLoss: averages over all B*(T-1) rows,
        # including padded rows (zero hidden, PAD target).
        loss = jnp.mean(nll)
    return loss, hn_out


# ----------------------------------------------------------------------------
if __name__ == "__main__":
    vocab_sz = 50
    emb_sz = 32
    hidden_sz = 32
    cutoffs = [10, 20]
    b, T = 2, 8

    key = jax.random.PRNGKey(0)
    kp, kx = jax.random.split(key)
    params = build_params(kp, vocab_sz, emb_sz, hidden_sz, cutoffs)

    # Tokens in [1, V); lengths sorted descending (pack_padded_sequence convention),
    # positions past each length set to PAD.
    x = jax.random.randint(kx, (b, T), 1, vocab_sz, dtype=jnp.int32)
    lengths = jnp.array([8, 6], dtype=jnp.int32)
    x = x.at[1, 6:].set(PAD)
    hidden = jnp.zeros((1, b, hidden_sz), jnp.float32)         # init_hidden

    loss, hn = base_lm_forward(params, x, lengths, hidden, vocab_sz, output_probs=False)
    logprob, _ = base_lm_forward(params, x, lengths, hidden, vocab_sz, output_probs=True)
    jax.block_until_ready((loss, hn, logprob))

    assert loss.shape == ()
    assert hn.shape == (1, b, hidden_sz)
    assert logprob.shape == (b, T - 1, vocab_sz)
    assert bool(jnp.isfinite(loss))
    # Adaptive log-softmax rows must normalize: logsumexp over the vocab ~ 0.
    lse = jax.scipy.special.logsumexp(logprob, axis=-1)
    assert bool(jnp.all(jnp.abs(lse) < 1e-3))
    print("KERNEL_OK")
</pallas_src>

<mosaic_0001>
module attributes {stable_mosaic.version = 11 : i64} {
  func.func @_gru_kernel(%arg0: i32, %arg1: i32, %arg2: memref<8x8x32xbf16, #tpu.memory_space<vmem>>, %arg3: memref<8x32xf32, #tpu.memory_space<vmem>>, %arg4: memref<8x1xi32, #tpu.memory_space<vmem>>, %arg5: memref<32x96xbf16, #tpu.memory_space<vmem>>, %arg6: memref<32x96xbf16, #tpu.memory_space<vmem>>, %arg7: memref<1x96xf32, #tpu.memory_space<vmem>>, %arg8: memref<1x96xf32, #tpu.memory_space<vmem>>, %arg9: memref<8x8x32xbf16, #tpu.memory_space<vmem>>, %arg10: memref<8x32xf32, #tpu.memory_space<vmem>>, %arg11: memref<64x96xf32, #tpu.memory_space<vmem>>) attributes {dimension_semantics = [#tpu.dimension_semantics<parallel>, #tpu.dimension_semantics<arbitrary>], iteration_bounds = array<i64: 1, 1>, scalar_prefetch = 0 : i64, scratch_operands = 1 : i64, tpu.core_type = #tpu.core_type<tc>, window_params = [{transform_indices = @transform_0, window_bounds = array<i64: 8, 8, 32>}, {transform_indices = @transform_1, window_bounds = array<i64: 8, 32>}, {transform_indices = @transform_2, window_bounds = array<i64: 8, 1>}, {pipeline_mode = #tpu.pipeline_mode<synchronous>, transform_indices = @transform_3, window_bounds = array<i64: 32, 96>}, {pipeline_mode = #tpu.pipeline_mode<synchronous>, transform_indices = @transform_4, window_bounds = array<i64: 32, 96>}, {pipeline_mode = #tpu.pipeline_mode<synchronous>, transform_indices = @transform_5, window_bounds = array<i64: 1, 96>}, {pipeline_mode = #tpu.pipeline_mode<synchronous>, transform_indices = @transform_6, window_bounds = array<i64: 1, 96>}, {transform_indices = @transform_7, window_bounds = array<i64: 8, 8, 32>}, {transform_indices = @transform_8, window_bounds = array<i64: 8, 32>}]} {
    %c0_i32 = arith.constant 0 : i32
    %0 = arith.cmpi eq, %arg1, %c0_i32 : i32
    %1 = arith.extui %0 : i1 to i32
    %c0_i32_0 = arith.constant 0 : i32
    %2 = arith.cmpi ne, %1, %c0_i32_0 : i32
    scf.if %2 {
      %c0_93 = arith.constant 0 : index
      %c0_94 = arith.constant 0 : index
      %409 = vector.load %arg3[%c0_93, %c0_94] : memref<8x32xf32, #tpu.memory_space<vmem>>, vector<8x32xf32>
      %c0_95 = arith.constant 0 : index
      %c0_96 = arith.constant 0 : index
      %410 = vector.load %arg10[%c0_95, %c0_96] : memref<8x32xf32, #tpu.memory_space<vmem>>, vector<8x32xf32>
      tpu.vector_store %arg10[%c0_95, %c0_96], %409 {strides = array<i32>} : memref<8x32xf32, #tpu.memory_space<vmem>>, vector<8x32xf32>,
    } else {
    }
    %c0 = arith.constant 0 : index
    %c0_1 = arith.constant 0 : index
    %c0_2 = arith.constant 0 : index
    %3 = vector.load %arg2[%c0, %c0_1, %c0_2] : memref<8x8x32xbf16, #tpu.memory_space<vmem>>, vector<8x8x32xbf16>
    %4 = vector.shape_cast %3 : vector<8x8x32xbf16> to vector<64x32xbf16>
    %c0_3 = arith.constant 0 : index
    %c0_4 = arith.constant 0 : index
    %5 = vector.load %arg5[%c0_3, %c0_4] : memref<32x96xbf16, #tpu.memory_space<vmem>>, vector<32x96xbf16>
    %cst = arith.constant dense<0.000000e+00> : vector<64x96xf32>
    %6 = tpu.matmul %4, %5, %cst {dimension_numbers = #tpu.dot_dimension_numbers<[1], [0], [0], [1], [0, 0, 1, 1], [], []>} : vector<64x32xbf16>, vector<32x96xbf16>, vector<64x96xf32> -> vector<64x96xf32>
    %c0_5 = arith.constant 0 : index
    %c0_6 = arith.constant 0 : index
    %7 = vector.load %arg7[%c0_5, %c0_6] : memref<1x96xf32, #tpu.memory_space<vmem>>, vector<1x96xf32>
    %8 = vector.broadcast %7 : vector<1x96xf32> to vector<64x96xf32>
    %9 = arith.addf %6, %8 : vector<64x96xf32>
    %c0_7 = arith.constant 0 : index
    %c0_8 = arith.constant 0 : index
    %10 = vector.load %arg11[%c0_7, %c0_8] : memref<64x96xf32, #tpu.memory_space<vmem>>, vector<64x96xf32>
    tpu.vector_store %arg11[%c0_7, %c0_8], %9 {strides = array<i32>} : memref<64x96xf32, #tpu.memory_space<vmem>>, vector<64x96xf32>,
    %c0_9 = arith.constant 0 : index
    %c0_10 = arith.constant 0 : index
    %11 = vector.load %arg6[%c0_9, %c0_10] : memref<32x96xbf16, #tpu.memory_space<vmem>>, vector<32x96xbf16>
    %c0_11 = arith.constant 0 : index
    %c0_12 = arith.constant 0 : index
    %12 = vector.load %arg8[%c0_11, %c0_12] : memref<1x96xf32, #tpu.memory_space<vmem>>, vector<1x96xf32>
    %c0_13 = arith.constant 0 : index
    %c0_14 = arith.constant 0 : index
    %13 = vector.load %arg4[%c0_13, %c0_14] : memref<8x1xi32, #tpu.memory_space<vmem>>, vector<8x1xi32>
    %c8_i32 = arith.constant 8 : i32
    %14 = arith.muli %arg1, %c8_i32 : i32
    %c0_15 = arith.constant 0 : index
    %c0_16 = arith.constant 0 : index
    %15 = vector.load %arg10[%c0_15, %c0_16] : memref<8x32xf32, #tpu.memory_space<vmem>>, vector<8x32xf32>
    %c0_i32_17 = arith.constant 0 : i32
    %c8_i32_18 = arith.constant 8 : i32
    %16 = arith.muli %c0_i32_17, %c8_i32_18 : i32
    %17 = tpu.assume_multiple %16, 8 : i32
    %18 = arith.index_cast %17 : i32 to index
    %c0_19 = arith.constant 0 : index
    %19 = vector.load %arg11[%18, %c0_19] : memref<64x96xf32, #tpu.memory_space<vmem>>, vector<8x96xf32>
    %20 = arith.truncf %15 : vector<8x32xf32> to vector<8x32xbf16>
    %cst_20 = arith.constant dense<0.000000e+00> : vector<8x96xf32>
    %21 = tpu.matmul %20, %11, %cst_20 {dimension_numbers = #tpu.dot_dimension_numbers<[1], [0], [0], [1], [0, 0, 1, 1], [], []>} : vector<8x32xbf16>, vector<32x96xbf16>, vector<8x96xf32> -> vector<8x96xf32>
    %22 = vector.broadcast %12 : vector<1x96xf32> to vector<8x96xf32>
    %23 = arith.addf %21, %22 : vector<8x96xf32>
    %24 = vector.extract_strided_slice %19 {offsets = [0, 0], sizes = [8, 32], strides = [1, 1]} : vector<8x96xf32> to vector<8x32xf32>
    %25 = vector.extract_strided_slice %23 {offsets = [0, 0], sizes = [8, 32], strides = [1, 1]} : vector<8x96xf32> to vector<8x32xf32>
    %26 = arith.addf %24, %25 : vector<8x32xf32>
    %27 = arith.negf %26 : vector<8x32xf32>
    %28 = math.exp %27 : vector<8x32xf32>
    %cst_21 = arith.constant 1.000000e+00 : f32
    %29 = vector.broadcast %cst_21 : f32 to vector<8x32xf32>
    %30 = arith.addf %29, %28 : vector<8x32xf32>
    %31 = arith.divf %29, %30 : vector<8x32xf32>
    %32 = vector.extract_strided_slice %19 {offsets = [0, 32], sizes = [8, 32], strides = [1, 1]} : vector<8x96xf32> to vector<8x32xf32>
    %33 = vector.extract_strided_slice %23 {offsets = [0, 32], sizes = [8, 32], strides = [1, 1]} : vector<8x96xf32> to vector<8x32xf32>
    %34 = arith.addf %32, %33 : vector<8x32xf32>
    %35 = arith.negf %34 : vector<8x32xf32>
    %36 = math.exp %35 : vector<8x32xf32>
    %cst_22 = arith.constant 1.000000e+00 : f32
    %37 = vector.broadcast %cst_22 : f32 to vector<8x32xf32>
    %38 = arith.addf %37, %36 : vector<8x32xf32>
    %39 = arith.divf %37, %38 : vector<8x32xf32>
    %40 = vector.extract_strided_slice %19 {offsets = [0, 64], sizes = [8, 32], strides = [1, 1]} : vector<8x96xf32> to vector<8x32xf32>
    %41 = vector.extract_strided_slice %23 {offsets = [0, 64], sizes = [8, 32], strides = [1, 1]} : vector<8x96xf32> to vector<8x32xf32>
    %42 = arith.mulf %31, %41 : vector<8x32xf32>
    %43 = arith.addf %40, %42 : vector<8x32xf32>
    %44 = math.tanh %43 : vector<8x32xf32>
    %cst_23 = arith.constant 1.000000e+00 : f32
    %45 = vector.broadcast %cst_23 : f32 to vector<8x32xf32>
    %46 = arith.subf %45, %39 : vector<8x32xf32>
    %47 = arith.mulf %46, %44 : vector<8x32xf32>
    %48 = arith.mulf %39, %15 : vector<8x32xf32>
    %49 = arith.addf %47, %48 : vector<8x32xf32>
    %50 = arith.addi %14, %c0_i32_17 : i32
    %51 = vector.broadcast %50 : i32 to vector<8x1xi32>
    %52 = arith.cmpi sgt, %13, %51 : vector<8x1xi32>
    %cst_24 = arith.constant 0.000000e+00 : f32
    %53 = vector.shape_cast %52 : vector<8x1xi1> to vector<8x1xi1>
    %54 = vector.broadcast %53 : vector<8x1xi1> to vector<8x32xi1>
    %55 = vector.broadcast %cst_24 : f32 to vector<8x32xf32>
    %56 = arith.select %54, %49, %55 : vector<8x32xi1>, vector<8x32xf32>
    %57 = arith.truncf %56 : vector<8x32xf32> to vector<8x32xbf16>
    %58 = arith.index_cast %c0_i32_17 : i32 to index
    %c0_25 = arith.constant 0 : index
    %c0_26 = arith.constant 0 : index
    %59 = vector.load %arg9[%58, %c0_25, %c0_26] : memref<8x8x32xbf16, #tpu.memory_space<vmem>>, vector<1x8x32xbf16>
    %60 = vector.shape_cast %59 : vector<1x8x32xbf16> to vector<8x32xbf16>
    %61 = vector.shape_cast %57 : vector<8x32xbf16> to vector<1x8x32xbf16>
    tpu.vector_store %arg9[%58, %c0_25, %c0_26], %61 {strides = array<i32>} : memref<8x8x32xbf16, #tpu.memory_space<vmem>>, vector<1x8x32xbf16>,
    %62 = vector.shape_cast %52 : vector<8x1xi1> to vector<8x1xi1>
    %63 = vector.broadcast %62 : vector<8x1xi1> to vector<8x32xi1>
    %64 = arith.select %63, %49, %15 : vector<8x32xi1>, vector<8x32xf32>
    %c1_i32 = arith.constant 1 : i32
    %c8_i32_27 = arith.constant 8 : i32
    %65 = arith.muli %c1_i32, %c8_i32_27 : i32
    %66 = tpu.assume_multiple %65, 8 : i32
    %67 = arith.index_cast %66 : i32 to index
    %c0_28 = arith.constant 0 : index
    %68 = vector.load %arg11[%67, %c0_28] : memref<64x96xf32, #tpu.memory_space<vmem>>, vector<8x96xf32>
    %69 = arith.truncf %64 : vector<8x32xf32> to vector<8x32xbf16>
    %cst_29 = arith.constant dense<0.000000e+00> : vector<8x96xf32>
    %70 = tpu.matmul %69, %11, %cst_29 {dimension_numbers = #tpu.dot_dimension_numbers<[1], [0], [0], [1], [0, 0, 1, 1], [], []>} : vector<8x32xbf16>, vector<32x96xbf16>, vector<8x96xf32> -> vector<8x96xf32>
    %71 = vector.broadcast %12 : vector<1x96xf32> to vector<8x96xf32>
    %72 = arith.addf %70, %71 : vector<8x96xf32>
    %73 = vector.extract_strided_slice %68 {offsets = [0, 0], sizes = [8, 32], strides = [1, 1]} : vector<8x96xf32> to vector<8x32xf32>
    %74 = vector.extract_strided_slice %72 {offsets = [0, 0], sizes = [8, 32], strides = [1, 1]} : vector<8x96xf32> to vector<8x32xf32>
    %75 = arith.addf %73, %74 : vector<8x32xf32>
    %76 = arith.negf %75 : vector<8x32xf32>
    %77 = math.exp %76 : vector<8x32xf32>
    %cst_30 = arith.constant 1.000000e+00 : f32
    %78 = vector.broadcast %cst_30 : f32 to vector<8x32xf32>
    %79 = arith.addf %78, %77 : vector<8x32xf32>
    %80 = arith.divf %78, %79 : vector<8x32xf32>
    %81 = vector.extract_strided_slice %68 {offsets = [0, 32], sizes = [8, 32], strides = [1, 1]} : vector<8x96xf32> to vector<8x32xf32>
    %82 = vector.extract_strided_slice %72 {offsets = [0, 32], sizes = [8, 32], strides = [1, 1]} : vector<8x96xf32> to vector<8x32xf32>
    %83 = arith.addf %81, %82 : vector<8x32xf32>
    %84 = arith.negf %83 : vector<8x32xf32>
    %85 = math.exp %84 : vector<8x32xf32>
    %cst_31 = arith.constant 1.000000e+00 : f32
    %86 = vector.broadcast %cst_31 : f32 to vector<8x32xf32>
    %87 = arith.addf %86, %85 : vector<8x32xf32>
    %88 = arith.divf %86, %87 : vector<8x32xf32>
    %89 = vector.extract_strided_slice %68 {offsets = [0, 64], sizes = [8, 32], strides = [1, 1]} : vector<8x96xf32> to vector<8x32xf32>
    %90 = vector.extract_strided_slice %72 {offsets = [0, 64], sizes = [8, 32], strides = [1, 1]} : vector<8x96xf32> to vector<8x32xf32>
    %91 = arith.mulf %80, %90 : vector<8x32xf32>
    %92 = arith.addf %89, %91 : vector<8x32xf32>
    %93 = math.tanh %92 : vector<8x32xf32>
    %cst_32 = arith.constant 1.000000e+00 : f32
    %94 = vector.broadcast %cst_32 : f32 to vector<8x32xf32>
    %95 = arith.subf %94, %88 : vector<8x32xf32>
    %96 = arith.mulf %95, %93 : vector<8x32xf32>
    %97 = arith.mulf %88, %64 : vector<8x32xf32>
    %98 = arith.addf %96, %97 : vector<8x32xf32>
    %99 = arith.addi %14, %c1_i32 : i32
    %100 = vector.broadcast %99 : i32 to vector<8x1xi32>
    %101 = arith.cmpi sgt, %13, %100 : vector<8x1xi32>
    %cst_33 = arith.constant 0.000000e+00 : f32
    %102 = vector.shape_cast %101 : vector<8x1xi1> to vector<8x1xi1>
    %103 = vector.broadcast %102 : vector<8x1xi1> to vector<8x32xi1>
    %104 = vector.broadcast %cst_33 : f32 to vector<8x32xf32>
    %105 = arith.select %103, %98, %104 : vector<8x32xi1>, vector<8x32xf32>
    %106 = arith.truncf %105 : vector<8x32xf32> to vector<8x32xbf16>
    %107 = arith.index_cast %c1_i32 : i32 to index
    %c0_34 = arith.constant 0 : index
    %c0_35 = arith.constant 0 : index
    %108 = vector.load %arg9[%107, %c0_34, %c0_35] : memref<8x8x32xbf16, #tpu.memory_space<vmem>>, vector<1x8x32xbf16>
    %109 = vector.shape_cast %108 : vector<1x8x32xbf16> to vector<8x32xbf16>
    %110 = vector.shape_cast %106 : vector<8x32xbf16> to vector<1x8x32xbf16>
    tpu.vector_store %arg9[%107, %c0_34, %c0_35], %110 {strides = array<i32>} : memref<8x8x32xbf16, #tpu.memory_space<vmem>>, vector<1x8x32xbf16>,
    %111 = vector.shape_cast %101 : vector<8x1xi1> to vector<8x1xi1>
    %112 = vector.broadcast %111 : vector<8x1xi1> to vector<8x32xi1>
    %113 = arith.select %112, %98, %64 : vector<8x32xi1>, vector<8x32xf32>
    %c2_i32 = arith.constant 2 : i32
    %c8_i32_36 = arith.constant 8 : i32
    %114 = arith.muli %c2_i32, %c8_i32_36 : i32
    %115 = tpu.assume_multiple %114, 8 : i32
    %116 = arith.index_cast %115 : i32 to index
    %c0_37 = arith.constant 0 : index
    %117 = vector.load %arg11[%116, %c0_37] : memref<64x96xf32, #tpu.memory_space<vmem>>, vector<8x96xf32>
    %118 = arith.truncf %113 : vector<8x32xf32> to vector<8x32xbf16>
    %cst_38 = arith.constant dense<0.000000e+00> : vector<8x96xf32>
    %119 = tpu.matmul %118, %11, %cst_38 {dimension_numbers = #tpu.dot_dimension_numbers<[1], [0], [0], [1], [0, 0, 1, 1], [], []>} : vector<8x32xbf16>, vector<32x96xbf16>, vector<8x96xf32> -> vector<8x96xf32>
    %120 = vector.broadcast %12 : vector<1x96xf32> to vector<8x96xf32>
    %121 = arith.addf %119, %120 : vector<8x96xf32>
    %122 = vector.extract_strided_slice %117 {offsets = [0, 0], sizes = [8, 32], strides = [1, 1]} : vector<8x96xf32> to vector<8x32xf32>
    %123 = vector.extract_strided_slice %121 {offsets = [0, 0], sizes = [8, 32], strides = [1, 1]} : vector<8x96xf32> to vector<8x32xf32>
    %124 = arith.addf %122, %123 : vector<8x32xf32>
    %125 = arith.negf %124 : vector<8x32xf32>
    %126 = math.exp %125 : vector<8x32xf32>
    %cst_39 = arith.constant 1.000000e+00 : f32
    %127 = vector.broadcast %cst_39 : f32 to vector<8x32xf32>
    %128 = arith.addf %127, %126 : vector<8x32xf32>
    %129 = arith.divf %127, %128 : vector<8x32xf32>
    %130 = vector.extract_strided_slice %117 {offsets = [0, 32], sizes = [8, 32], strides = [1, 1]} : vector<8x96xf32> to vector<8x32xf32>
    %131 = vector.extract_strided_slice %121 {offsets = [0, 32], sizes = [8, 32], strides = [1, 1]} : vector<8x96xf32> to vector<8x32xf32>
    %132 = arith.addf %130, %131 : vector<8x32xf32>
    %133 = arith.negf %132 : vector<8x32xf32>
    %134 = math.exp %133 : vector<8x32xf32>
    %cst_40 = arith.constant 1.000000e+00 : f32
    %135 = vector.broadcast %cst_40 : f32 to vector<8x32xf32>
    %136 = arith.addf %135, %134 : vector<8x32xf32>
    %137 = arith.divf %135, %136 : vector<8x32xf32>
    %138 = vector.extract_strided_slice %117 {offsets = [0, 64], sizes = [8, 32], strides = [1, 1]} : vector<8x96xf32> to vector<8x32xf32>
    %139 = vector.extract_strided_slice %121 {offsets = [0, 64], sizes = [8, 32], strides = [1, 1]} : vector<8x96xf32> to vector<8x32xf32>
    %140 = arith.mulf %129, %139 : vector<8x32xf32>
    %141 = arith.addf %138, %140 : vector<8x32xf32>
    %142 = math.tanh %141 : vector<8x32xf32>
    %cst_41 = arith.constant 1.000000e+00 : f32
    %143 = vector.broadcast %cst_41 : f32 to vector<8x32xf32>
    %144 = arith.subf %143, %137 : vector<8x32xf32>
    %145 = arith.mulf %144, %142 : vector<8x32xf32>
    %146 = arith.mulf %137, %113 : vector<8x32xf32>
    %147 = arith.addf %145, %146 : vector<8x32xf32>
    %148 = arith.addi %14, %c2_i32 : i32
    %149 = vector.broadcast %148 : i32 to vector<8x1xi32>
    %150 = arith.cmpi sgt, %13, %149 : vector<8x1xi32>
    %cst_42 = arith.constant 0.000000e+00 : f32
    %151 = vector.shape_cast %150 : vector<8x1xi1> to vector<8x1xi1>
    %152 = vector.broadcast %151 : vector<8x1xi1> to vector<8x32xi1>
    %153 = vector.broadcast %cst_42 : f32 to vector<8x32xf32>
    %154 = arith.select %152, %147, %153 : vector<8x32xi1>, vector<8x32xf32>
    %155 = arith.truncf %154 : vector<8x32xf32> to vector<8x32xbf16>
    %156 = arith.index_cast %c2_i32 : i32 to index
    %c0_43 = arith.constant 0 : index
    %c0_44 = arith.constant 0 : index
    %157 = vector.load %arg9[%156, %c0_43, %c0_44] : memref<8x8x32xbf16, #tpu.memory_space<vmem>>, vector<1x8x32xbf16>
    %158 = vector.shape_cast %157 : vector<1x8x32xbf16> to vector<8x32xbf16>
    %159 = vector.shape_cast %155 : vector<8x32xbf16> to vector<1x8x32xbf16>
    tpu.vector_store %arg9[%156, %c0_43, %c0_44], %159 {strides = array<i32>} : memref<8x8x32xbf16, #tpu.memory_space<vmem>>, vector<1x8x32xbf16>,
    %160 = vector.shape_cast %150 : vector<8x1xi1> to vector<8x1xi1>
    %161 = vector.broadcast %160 : vector<8x1xi1> to vector<8x32xi1>
    %162 = arith.select %161, %147, %113 : vector<8x32xi1>, vector<8x32xf32>
    %c3_i32 = arith.constant 3 : i32
    %c8_i32_45 = arith.constant 8 : i32
    %163 = arith.muli %c3_i32, %c8_i32_45 : i32
    %164 = tpu.assume_multiple %163, 8 : i32
    %165 = arith.index_cast %164 : i32 to index
    %c0_46 = arith.constant 0 : index
    %166 = vector.load %arg11[%165, %c0_46] : memref<64x96xf32, #tpu.memory_space<vmem>>, vector<8x96xf32>
    %167 = arith.truncf %162 : vector<8x32xf32> to vector<8x32xbf16>
    %cst_47 = arith.constant dense<0.000000e+00> : vector<8x96xf32>
    %168 = tpu.matmul %167, %11, %cst_47 {dimension_numbers = #tpu.dot_dimension_numbers<[1], [0], [0], [1], [0, 0, 1, 1], [], []>} : vector<8x32xbf16>, vector<32x96xbf16>, vector<8x96xf32> -> vector<8x96xf32>
    %169 = vector.broadcast %12 : vector<1x96xf32> to vector<8x96xf32>
    %170 = arith.addf %168, %169 : vector<8x96xf32>
    %171 = vector.extract_strided_slice %166 {offsets = [0, 0], sizes = [8, 32], strides = [1, 1]} : vector<8x96xf32> to vector<8x32xf32>
    %172 = vector.extract_strided_slice %170 {offsets = [0, 0], sizes = [8, 32], strides = [1, 1]} : vector<8x96xf32> to vector<8x32xf32>
    %173 = arith.addf %171, %172 : vector<8x32xf32>
    %174 = arith.negf %173 : vector<8x32xf32>
    %175 = math.exp %174 : vector<8x32xf32>
    %cst_48 = arith.constant 1.000000e+00 : f32
    %176 = vector.broadcast %cst_48 : f32 to vector<8x32xf32>
    %177 = arith.addf %176, %175 : vector<8x32xf32>
    %178 = arith.divf %176, %177 : vector<8x32xf32>
    %179 = vector.extract_strided_slice %166 {offsets = [0, 32], sizes = [8, 32], strides = [1, 1]} : vector<8x96xf32> to vector<8x32xf32>
    %180 = vector.extract_strided_slice %170 {offsets = [0, 32], sizes = [8, 32], strides = [1, 1]} : vector<8x96xf32> to vector<8x32xf32>
    %181 = arith.addf %179, %180 : vector<8x32xf32>
    %182 = arith.negf %181 : vector<8x32xf32>
    %183 = math.exp %182 : vector<8x32xf32>
    %cst_49 = arith.constant 1.000000e+00 : f32
    %184 = vector.broadcast %cst_49 : f32 to vector<8x32xf32>
    %185 = arith.addf %184, %183 : vector<8x32xf32>
    %186 = arith.divf %184, %185 : vector<8x32xf32>
    %187 = vector.extract_strided_slice %166 {offsets = [0, 64], sizes = [8, 32], strides = [1, 1]} : vector<8x96xf32> to vector<8x32xf32>
    %188 = vector.extract_strided_slice %170 {offsets = [0, 64], sizes = [8, 32], strides = [1, 1]} : vector<8x96xf32> to vector<8x32xf32>
    %189 = arith.mulf %178, %188 : vector<8x32xf32>
    %190 = arith.addf %187, %189 : vector<8x32xf32>
    %191 = math.tanh %190 : vector<8x32xf32>
    %cst_50 = arith.constant 1.000000e+00 : f32
    %192 = vector.broadcast %cst_50 : f32 to vector<8x32xf32>
    %193 = arith.subf %192, %186 : vector<8x32xf32>
    %194 = arith.mulf %193, %191 : vector<8x32xf32>
    %195 = arith.mulf %186, %162 : vector<8x32xf32>
    %196 = arith.addf %194, %195 : vector<8x32xf32>
    %197 = arith.addi %14, %c3_i32 : i32
    %198 = vector.broadcast %197 : i32 to vector<8x1xi32>
    %199 = arith.cmpi sgt, %13, %198 : vector<8x1xi32>
    %cst_51 = arith.constant 0.000000e+00 : f32
    %200 = vector.shape_cast %199 : vector<8x1xi1> to vector<8x1xi1>
    %201 = vector.broadcast %200 : vector<8x1xi1> to vector<8x32xi1>
    %202 = vector.broadcast %cst_51 : f32 to vector<8x32xf32>
    %203 = arith.select %201, %196, %202 : vector<8x32xi1>, vector<8x32xf32>
    %204 = arith.truncf %203 : vector<8x32xf32> to vector<8x32xbf16>
    %205 = arith.index_cast %c3_i32 : i32 to index
    %c0_52 = arith.constant 0 : index
    %c0_53 = arith.constant 0 : index
    %206 = vector.load %arg9[%205, %c0_52, %c0_53] : memref<8x8x32xbf16, #tpu.memory_space<vmem>>, vector<1x8x32xbf16>
    %207 = vector.shape_cast %206 : vector<1x8x32xbf16> to vector<8x32xbf16>
    %208 = vector.shape_cast %204 : vector<8x32xbf16> to vector<1x8x32xbf16>
    tpu.vector_store %arg9[%205, %c0_52, %c0_53], %208 {strides = array<i32>} : memref<8x8x32xbf16, #tpu.memory_space<vmem>>, vector<1x8x32xbf16>,
    %209 = vector.shape_cast %199 : vector<8x1xi1> to vector<8x1xi1>
    %210 = vector.broadcast %209 : vector<8x1xi1> to vector<8x32xi1>
    %211 = arith.select %210, %196, %162 : vector<8x32xi1>, vector<8x32xf32>
    %c4_i32 = arith.constant 4 : i32
    %c8_i32_54 = arith.constant 8 : i32
    %212 = arith.muli %c4_i32, %c8_i32_54 : i32
    %213 = tpu.assume_multiple %212, 8 : i32
    %214 = arith.index_cast %213 : i32 to index
    %c0_55 = arith.constant 0 : index
    %215 = vector.load %arg11[%214, %c0_55] : memref<64x96xf32, #tpu.memory_space<vmem>>, vector<8x96xf32>
    %216 = arith.truncf %211 : vector<8x32xf32> to vector<8x32xbf16>
    %cst_56 = arith.constant dense<0.000000e+00> : vector<8x96xf32>
    %217 = tpu.matmul %216, %11, %cst_56 {dimension_numbers = #tpu.dot_dimension_numbers<[1], [0], [0], [1], [0, 0, 1, 1], [], []>} : vector<8x32xbf16>, vector<32x96xbf16>, vector<8x96xf32> -> vector<8x96xf32>
    %218 = vector.broadcast %12 : vector<1x96xf32> to vector<8x96xf32>
    %219 = arith.addf %217, %218 : vector<8x96xf32>
    %220 = vector.extract_strided_slice %215 {offsets = [0, 0], sizes = [8, 32], strides = [1, 1]} : vector<8x96xf32> to vector<8x32xf32>
    %221 = vector.extract_strided_slice %219 {offsets = [0, 0], sizes = [8, 32], strides = [1, 1]} : vector<8x96xf32> to vector<8x32xf32>
    %222 = arith.addf %220, %221 : vector<8x32xf32>
    %223 = arith.negf %222 : vector<8x32xf32>
    %224 = math.exp %223 : vector<8x32xf32>
    %cst_57 = arith.constant 1.000000e+00 : f32
    %225 = vector.broadcast %cst_57 : f32 to vector<8x32xf32>
    %226 = arith.addf %225, %224 : vector<8x32xf32>
    %227 = arith.divf %225, %226 : vector<8x32xf32>
    %228 = vector.extract_strided_slice %215 {offsets = [0, 32], sizes = [8, 32], strides = [1, 1]} : vector<8x96xf32> to vector<8x32xf32>
    %229 = vector.extract_strided_slice %219 {offsets = [0, 32], sizes = [8, 32], strides = [1, 1]} : vector<8x96xf32> to vector<8x32xf32>
    %230 = arith.addf %228, %229 : vector<8x32xf32>
    %231 = arith.negf %230 : vector<8x32xf32>
    %232 = math.exp %231 : vector<8x32xf32>
    %cst_58 = arith.constant 1.000000e+00 : f32
    %233 = vector.broadcast %cst_58 : f32 to vector<8x32xf32>
    %234 = arith.addf %233, %232 : vector<8x32xf32>
    %235 = arith.divf %233, %234 : vector<8x32xf32>
    %236 = vector.extract_strided_slice %215 {offsets = [0, 64], sizes = [8, 32], strides = [1, 1]} : vector<8x96xf32> to vector<8x32xf32>
    %237 = vector.extract_strided_slice %219 {offsets = [0, 64], sizes = [8, 32], strides = [1, 1]} : vector<8x96xf32> to vector<8x32xf32>
    %238 = arith.mulf %227, %237 : vector<8x32xf32>
    %239 = arith.addf %236, %238 : vector<8x32xf32>
    %240 = math.tanh %239 : vector<8x32xf32>
    %cst_59 = arith.constant 1.000000e+00 : f32
    %241 = vector.broadcast %cst_59 : f32 to vector<8x32xf32>
    %242 = arith.subf %241, %235 : vector<8x32xf32>
    %243 = arith.mulf %242, %240 : vector<8x32xf32>
    %244 = arith.mulf %235, %211 : vector<8x32xf32>
    %245 = arith.addf %243, %244 : vector<8x32xf32>
    %246 = arith.addi %14, %c4_i32 : i32
    %247 = vector.broadcast %246 : i32 to vector<8x1xi32>
    %248 = arith.cmpi sgt, %13, %247 : vector<8x1xi32>
    %cst_60 = arith.constant 0.000000e+00 : f32
    %249 = vector.shape_cast %248 : vector<8x1xi1> to vector<8x1xi1>
    %250 = vector.broadcast %249 : vector<8x1xi1> to vector<8x32xi1>
    %251 = vector.broadcast %cst_60 : f32 to vector<8x32xf32>
    %252 = arith.select %250, %245, %251 : vector<8x32xi1>, vector<8x32xf32>
    %253 = arith.truncf %252 : vector<8x32xf32> to vector<8x32xbf16>
    %254 = arith.index_cast %c4_i32 : i32 to index
    %c0_61 = arith.constant 0 : index
    %c0_62 = arith.constant 0 : index
    %255 = vector.load %arg9[%254, %c0_61, %c0_62] : memref<8x8x32xbf16, #tpu.memory_space<vmem>>, vector<1x8x32xbf16>
    %256 = vector.shape_cast %255 : vector<1x8x32xbf16> to vector<8x32xbf16>
    %257 = vector.shape_cast %253 : vector<8x32xbf16> to vector<1x8x32xbf16>
    tpu.vector_store %arg9[%254, %c0_61, %c0_62], %257 {strides = array<i32>} : memref<8x8x32xbf16, #tpu.memory_space<vmem>>, vector<1x8x32xbf16>,
    %258 = vector.shape_cast %248 : vector<8x1xi1> to vector<8x1xi1>
    %259 = vector.broadcast %258 : vector<8x1xi1> to vector<8x32xi1>
    %260 = arith.select %259, %245, %211 : vector<8x32xi1>, vector<8x32xf32>
    %c5_i32 = arith.constant 5 : i32
    %c8_i32_63 = arith.constant 8 : i32
    %261 = arith.muli %c5_i32, %c8_i32_63 : i32
    %262 = tpu.assume_multiple %261, 8 : i32
    %263 = arith.index_cast %262 : i32 to index
    %c0_64 = arith.constant 0 : index
    %264 = vector.load %arg11[%263, %c0_64] : memref<64x96xf32, #tpu.memory_space<vmem>>, vector<8x96xf32>
    %265 = arith.truncf %260 : vector<8x32xf32> to vector<8x32xbf16>
    %cst_65 = arith.constant dense<0.000000e+00> : vector<8x96xf32>
    %266 = tpu.matmul %265, %11, %cst_65 {dimension_numbers = #tpu.dot_dimension_numbers<[1], [0], [0], [1], [0, 0, 1, 1], [], []>} : vector<8x32xbf16>, vector<32x96xbf16>, vector<8x96xf32> -> vector<8x96xf32>
    %267 = vector.broadcast %12 : vector<1x96xf32> to vector<8x96xf32>
    %268 = arith.addf %266, %267 : vector<8x96xf32>
    %269 = vector.extract_strided_slice %264 {offsets = [0, 0], sizes = [8, 32], strides = [1, 1]} : vector<8x96xf32> to vector<8x32xf32>
    %270 = vector.extract_strided_slice %268 {offsets = [0, 0], sizes = [8, 32], strides = [1, 1]} : vector<8x96xf32> to vector<8x32xf32>
    %271 = arith.addf %269, %270 : vector<8x32xf32>
    %272 = arith.negf %271 : vector<8x32xf32>
    %273 = math.exp %272 : vector<8x32xf32>
    %cst_66 = arith.constant 1.000000e+00 : f32
    %274 = vector.broadcast %cst_66 : f32 to vector<8x32xf32>
    %275 = arith.addf %274, %273 : vector<8x32xf32>
    %276 = arith.divf %274, %275 : vector<8x32xf32>
    %277 = vector.extract_strided_slice %264 {offsets = [0, 32], sizes = [8, 32], strides = [1, 1]} : vector<8x96xf32> to vector<8x32xf32>
    %278 = vector.extract_strided_slice %268 {offsets = [0, 32], sizes = [8, 32], strides = [1, 1]} : vector<8x96xf32> to vector<8x32xf32>
    %279 = arith.addf %277, %278 : vector<8x32xf32>
    %280 = arith.negf %279 : vector<8x32xf32>
    %281 = math.exp %280 : vector<8x32xf32>
    %cst_67 = arith.constant 1.000000e+00 : f32
    %282 = vector.broadcast %cst_67 : f32 to vector<8x32xf32>
    %283 = arith.addf %282, %281 : vector<8x32xf32>
    %284 = arith.divf %282, %283 : vector<8x32xf32>
    %285 = vector.extract_strided_slice %264 {offsets = [0, 64], sizes = [8, 32], strides = [1, 1]} : vector<8x96xf32> to vector<8x32xf32>
    %286 = vector.extract_strided_slice %268 {offsets = [0, 64], sizes = [8, 32], strides = [1, 1]} : vector<8x96xf32> to vector<8x32xf32>
    %287 = arith.mulf %276, %286 : vector<8x32xf32>
    %288 = arith.addf %285, %287 : vector<8x32xf32>
    %289 = math.tanh %288 : vector<8x32xf32>
    %cst_68 = arith.constant 1.000000e+00 : f32
    %290 = vector.broadcast %cst_68 : f32 to vector<8x32xf32>
    %291 = arith.subf %290, %284 : vector<8x32xf32>
    %292 = arith.mulf %291, %289 : vector<8x32xf32>
    %293 = arith.mulf %284, %260 : vector<8x32xf32>
    %294 = arith.addf %292, %293 : vector<8x32xf32>
    %295 = arith.addi %14, %c5_i32 : i32
    %296 = vector.broadcast %295 : i32 to vector<8x1xi32>
    %297 = arith.cmpi sgt, %13, %296 : vector<8x1xi32>
    %cst_69 = arith.constant 0.000000e+00 : f32
    %298 = vector.shape_cast %297 : vector<8x1xi1> to vector<8x1xi1>
    %299 = vector.broadcast %298 : vector<8x1xi1> to vector<8x32xi1>
    %300 = vector.broadcast %cst_69 : f32 to vector<8x32xf32>
    %301 = arith.select %299, %294, %300 : vector<8x32xi1>, vector<8x32xf32>
    %302 = arith.truncf %301 : vector<8x32xf32> to vector<8x32xbf16>
    %303 = arith.index_cast %c5_i32 : i32 to index
    %c0_70 = arith.constant 0 : index
    %c0_71 = arith.constant 0 : index
    %304 = vector.load %arg9[%303, %c0_70, %c0_71] : memref<8x8x32xbf16, #tpu.memory_space<vmem>>, vector<1x8x32xbf16>
    %305 = vector.shape_cast %304 : vector<1x8x32xbf16> to vector<8x32xbf16>
    %306 = vector.shape_cast %302 : vector<8x32xbf16> to vector<1x8x32xbf16>
    tpu.vector_store %arg9[%303, %c0_70, %c0_71], %306 {strides = array<i32>} : memref<8x8x32xbf16, #tpu.memory_space<vmem>>, vector<1x8x32xbf16>,
    %307 = vector.shape_cast %297 : vector<8x1xi1> to vector<8x1xi1>
    %308 = vector.broadcast %307 : vector<8x1xi1> to vector<8x32xi1>
    %309 = arith.select %308, %294, %260 : vector<8x32xi1>, vector<8x32xf32>
    %c6_i32 = arith.constant 6 : i32
    %c8_i32_72 = arith.constant 8 : i32
    %310 = arith.muli %c6_i32, %c8_i32_72 : i32
    %311 = tpu.assume_multiple %310, 8 : i32
    %312 = arith.index_cast %311 : i32 to index
    %c0_73 = arith.constant 0 : index
    %313 = vector.load %arg11[%312, %c0_73] : memref<64x96xf32, #tpu.memory_space<vmem>>, vector<8x96xf32>
    %314 = arith.truncf %309 : vector<8x32xf32> to vector<8x32xbf16>
    %cst_74 = arith.constant dense<0.000000e+00> : vector<8x96xf32>
    %315 = tpu.matmul %314, %11, %cst_74 {dimension_numbers = #tpu.dot_dimension_numbers<[1], [0], [0], [1], [0, 0, 1, 1], [], []>} : vector<8x32xbf16>, vector<32x96xbf16>, vector<8x96xf32> -> vector<8x96xf32>
    %316 = vector.broadcast %12 : vector<1x96xf32> to vector<8x96xf32>
    %317 = arith.addf %315, %316 : vector<8x96xf32>
    %318 = vector.extract_strided_slice %313 {offsets = [0, 0], sizes = [8, 32], strides = [1, 1]} : vector<8x96xf32> to vector<8x32xf32>
    %319 = vector.extract_strided_slice %317 {offsets = [0, 0], sizes = [8, 32], strides = [1, 1]} : vector<8x96xf32> to vector<8x32xf32>
    %320 = arith.addf %318, %319 : vector<8x32xf32>
    %321 = arith.negf %320 : vector<8x32xf32>
    %322 = math.exp %321 : vector<8x32xf32>
    %cst_75 = arith.constant 1.000000e+00 : f32
    %323 = vector.broadcast %cst_75 : f32 to vector<8x32xf32>
    %324 = arith.addf %323, %322 : vector<8x32xf32>
    %325 = arith.divf %323, %324 : vector<8x32xf32>
    %326 = vector.extract_strided_slice %313 {offsets = [0, 32], sizes = [8, 32], strides = [1, 1]} : vector<8x96xf32> to vector<8x32xf32>
    %327 = vector.extract_strided_slice %317 {offsets = [0, 32], sizes = [8, 32], strides = [1, 1]} : vector<8x96xf32> to vector<8x32xf32>
    %328 = arith.addf %326, %327 : vector<8x32xf32>
    %329 = arith.negf %328 : vector<8x32xf32>
    %330 = math.exp %329 : vector<8x32xf32>
    %cst_76 = arith.constant 1.000000e+00 : f32
    %331 = vector.broadcast %cst_76 : f32 to vector<8x32xf32>
    %332 = arith.addf %331, %330 : vector<8x32xf32>
    %333 = arith.divf %331, %332 : vector<8x32xf32>
    %334 = vector.extract_strided_slice %313 {offsets = [0, 64], sizes = [8, 32], strides = [1, 1]} : vector<8x96xf32> to vector<8x32xf32>
    %335 = vector.extract_strided_slice %317 {offsets = [0, 64], sizes = [8, 32], strides = [1, 1]} : vector<8x96xf32> to vector<8x32xf32>
    %336 = arith.mulf %325, %335 : vector<8x32xf32>
    %337 = arith.addf %334, %336 : vector<8x32xf32>
    %338 = math.tanh %337 : vector<8x32xf32>
    %cst_77 = arith.constant 1.000000e+00 : f32
    %339 = vector.broadcast %cst_77 : f32 to vector<8x32xf32>
    %340 = arith.subf %339, %333 : vector<8x32xf32>
    %341 = arith.mulf %340, %338 : vector<8x32xf32>
    %342 = arith.mulf %333, %309 : vector<8x32xf32>
    %343 = arith.addf %341, %342 : vector<8x32xf32>
    %344 = arith.addi %14, %c6_i32 : i32
    %345 = vector.broadcast %344 : i32 to vector<8x1xi32>
    %346 = arith.cmpi sgt, %13, %345 : vector<8x1xi32>
    %cst_78 = arith.constant 0.000000e+00 : f32
    %347 = vector.shape_cast %346 : vector<8x1xi1> to vector<8x1xi1>
    %348 = vector.broadcast %347 : vector<8x1xi1> to vector<8x32xi1>
    %349 = vector.broadcast %cst_78 : f32 to vector<8x32xf32>
    %350 = arith.select %348, %343, %349 : vector<8x32xi1>, vector<8x32xf32>
    %351 = arith.truncf %350 : vector<8x32xf32> to vector<8x32xbf16>
    %352 = arith.index_cast %c6_i32 : i32 to index
    %c0_79 = arith.constant 0 : index
    %c0_80 = arith.constant 0 : index
    %353 = vector.load %arg9[%352, %c0_79, %c0_80] : memref<8x8x32xbf16, #tpu.memory_space<vmem>>, vector<1x8x32xbf16>
    %354 = vector.shape_cast %353 : vector<1x8x32xbf16> to vector<8x32xbf16>
    %355 = vector.shape_cast %351 : vector<8x32xbf16> to vector<1x8x32xbf16>
    tpu.vector_store %arg9[%352, %c0_79, %c0_80], %355 {strides = array<i32>} : memref<8x8x32xbf16, #tpu.memory_space<vmem>>, vector<1x8x32xbf16>,
    %356 = vector.shape_cast %346 : vector<8x1xi1> to vector<8x1xi1>
    %357 = vector.broadcast %356 : vector<8x1xi1> to vector<8x32xi1>
    %358 = arith.select %357, %343, %309 : vector<8x32xi1>, vector<8x32xf32>
    %c7_i32 = arith.constant 7 : i32
    %c8_i32_81 = arith.constant 8 : i32
    %359 = arith.muli %c7_i32, %c8_i32_81 : i32
    %360 = tpu.assume_multiple %359, 8 : i32
    %361 = arith.index_cast %360 : i32 to index
    %c0_82 = arith.constant 0 : index
    %362 = vector.load %arg11[%361, %c0_82] : memref<64x96xf32, #tpu.memory_space<vmem>>, vector<8x96xf32>
    %363 = arith.truncf %358 : vector<8x32xf32> to vector<8x32xbf16>
    %cst_83 = arith.constant dense<0.000000e+00> : vector<8x96xf32>
    %364 = tpu.matmul %363, %11, %cst_83 {dimension_numbers = #tpu.dot_dimension_numbers<[1], [0], [0], [1], [0, 0, 1, 1], [], []>} : vector<8x32xbf16>, vector<32x96xbf16>, vector<8x96xf32> -> vector<8x96xf32>
    %365 = vector.broadcast %12 : vector<1x96xf32> to vector<8x96xf32>
    %366 = arith.addf %364, %365 : vector<8x96xf32>
    %367 = vector.extract_strided_slice %362 {offsets = [0, 0], sizes = [8, 32], strides = [1, 1]} : vector<8x96xf32> to vector<8x32xf32>
    %368 = vector.extract_strided_slice %366 {offsets = [0, 0], sizes = [8, 32], strides = [1, 1]} : vector<8x96xf32> to vector<8x32xf32>
    %369 = arith.addf %367, %368 : vector<8x32xf32>
    %370 = arith.negf %369 : vector<8x32xf32>
    %371 = math.exp %370 : vector<8x32xf32>
    %cst_84 = arith.constant 1.000000e+00 : f32
    %372 = vector.broadcast %cst_84 : f32 to vector<8x32xf32>
    %373 = arith.addf %372, %371 : vector<8x32xf32>
    %374 = arith.divf %372, %373 : vector<8x32xf32>
    %375 = vector.extract_strided_slice %362 {offsets = [0, 32], sizes = [8, 32], strides = [1, 1]} : vector<8x96xf32> to vector<8x32xf32>
    %376 = vector.extract_strided_slice %366 {offsets = [0, 32], sizes = [8, 32], strides = [1, 1]} : vector<8x96xf32> to vector<8x32xf32>
    %377 = arith.addf %375, %376 : vector<8x32xf32>
    %378 = arith.negf %377 : vector<8x32xf32>
    %379 = math.exp %378 : vector<8x32xf32>
    %cst_85 = arith.constant 1.000000e+00 : f32
    %380 = vector.broadcast %cst_85 : f32 to vector<8x32xf32>
    %381 = arith.addf %380, %379 : vector<8x32xf32>
    %382 = arith.divf %380, %381 : vector<8x32xf32>
    %383 = vector.extract_strided_slice %362 {offsets = [0, 64], sizes = [8, 32], strides = [1, 1]} : vector<8x96xf32> to vector<8x32xf32>
    %384 = vector.extract_strided_slice %366 {offsets = [0, 64], sizes = [8, 32], strides = [1, 1]} : vector<8x96xf32> to vector<8x32xf32>
    %385 = arith.mulf %374, %384 : vector<8x32xf32>
    %386 = arith.addf %383, %385 : vector<8x32xf32>
    %387 = math.tanh %386 : vector<8x32xf32>
    %cst_86 = arith.constant 1.000000e+00 : f32
    %388 = vector.broadcast %cst_86 : f32 to vector<8x32xf32>
    %389 = arith.subf %388, %382 : vector<8x32xf32>
    %390 = arith.mulf %389, %387 : vector<8x32xf32>
    %391 = arith.mulf %382, %358 : vector<8x32xf32>
    %392 = arith.addf %390, %391 : vector<8x32xf32>
    %393 = arith.addi %14, %c7_i32 : i32
    %394 = vector.broadcast %393 : i32 to vector<8x1xi32>
    %395 = arith.cmpi sgt, %13, %394 : vector<8x1xi32>
    %cst_87 = arith.constant 0.000000e+00 : f32
    %396 = vector.shape_cast %395 : vector<8x1xi1> to vector<8x1xi1>
    %397 = vector.broadcast %396 : vector<8x1xi1> to vector<8x32xi1>
    %398 = vector.broadcast %cst_87 : f32 to vector<8x32xf32>
    %399 = arith.select %397, %392, %398 : vector<8x32xi1>, vector<8x32xf32>
    %400 = arith.truncf %399 : vector<8x32xf32> to vector<8x32xbf16>
    %401 = arith.index_cast %c7_i32 : i32 to index
    %c0_88 = arith.constant 0 : index
    %c0_89 = arith.constant 0 : index
    %402 = vector.load %arg9[%401, %c0_88, %c0_89] : memref<8x8x32xbf16, #tpu.memory_space<vmem>>, vector<1x8x32xbf16>
    %403 = vector.shape_cast %402 : vector<1x8x32xbf16> to vector<8x32xbf16>
    %404 = vector.shape_cast %400 : vector<8x32xbf16> to vector<1x8x32xbf16>
    tpu.vector_store %arg9[%401, %c0_88, %c0_89], %404 {strides = array<i32>} : memref<8x8x32xbf16, #tpu.memory_space<vmem>>, vector<1x8x32xbf16>,
    %405 = vector.shape_cast %395 : vector<8x1xi1> to vector<8x1xi1>
    %406 = vector.broadcast %405 : vector<8x1xi1> to vector<8x32xi1>
    %407 = arith.select %406, %392, %358 : vector<8x32xi1>, vector<8x32xf32>
    %c8_i32_90 = arith.constant 8 : i32
    %c0_91 = arith.constant 0 : index
    %c0_92 = arith.constant 0 : index
    %408 = vector.load %arg10[%c0_91, %c0_92] : memref<8x32xf32, #tpu.memory_space<vmem>>, vector<8x32xf32>
    tpu.vector_store %arg10[%c0_91, %c0_92], %407 {strides = array<i32>} : memref<8x32xf32, #tpu.memory_space<vmem>>, vector<8x32xf32>,
    return
  }
  func.func @transform_0(%arg0: i32, %arg1: i32) -> (i32, i32, i32) {
    %c0_i32 = arith.constant 0 : i32
    %c0_i32_0 = arith.constant 0 : i32
    return %arg1, %arg0, %c0_i32 : i32, i32, i32
  }
  func.func @transform_1(%arg0: i32, %arg1: i32) -> (i32, i32) {
    %c0_i32 = arith.constant 0 : i32
    %c0_i32_0 = arith.constant 0 : i32
    return %arg0, %c0_i32 : i32, i32
  }
  func.func @transform_2(%arg0: i32, %arg1: i32) -> (i32, i32) {
    %c0_i32 = arith.constant 0 : i32
    %c0_i32_0 = arith.constant 0 : i32
    return %arg0, %c0_i32 : i32, i32
  }
  func.func @transform_3(%arg0: i32, %arg1: i32) -> (i32, i32) {
    %c0_i32 = arith.constant 0 : i32
    %c0_i32_0 = arith.constant 0 : i32
    %c0_i32_1 = arith.constant 0 : i32
    return %c0_i32, %c0_i32_0 : i32, i32
  }
  func.func @transform_4(%arg0: i32, %arg1: i32) -> (i32, i32) {
    %c0_i32 = arith.constant 0 : i32
    %c0_i32_0 = arith.constant 0 : i32
    %c0_i32_1 = arith.constant 0 : i32
    return %c0_i32, %c0_i32_0 : i32, i32
  }
  func.func @transform_5(%arg0: i32, %arg1: i32) -> (i32, i32) {
    %c0_i32 = arith.constant 0 : i32
    %c0_i32_0 = arith.constant 0 : i32
    %c0_i32_1 = arith.constant 0 : i32
    return %c0_i32, %c0_i32_0 : i32, i32
  }
  func.func @transform_6(%arg0: i32, %arg1: i32) -> (i32, i32) {
    %c0_i32 = arith.constant 0 : i32
    %c0_i32_0 = arith.constant 0 : i32
    %c0_i32_1 = arith.constant 0 : i32
    return %c0_i32, %c0_i32_0 : i32, i32
  }
  func.func @transform_7(%arg0: i32, %arg1: i32) -> (i32, i32, i32) {
    %c0_i32 = arith.constant 0 : i32
    %c0_i32_0 = arith.constant 0 : i32
    return %arg1, %arg0, %c0_i32 : i32, i32, i32
  }
  func.func @transform_8(%arg0: i32, %arg1: i32) -> (i32, i32) {
    %c0_i32 = arith.constant 0 : i32
    %c0_i32_0 = arith.constant 0 : i32
    return %arg0, %c0_i32 : i32, i32
  }
}

</mosaic_0001>

<llo_original>
// kernel: tpu_custom_call.1
$region0: #{tpu_custom_call.1}
  #allocation0 [shape = 'u32[]', space=smem, size = 0x4, offset = 0x4, fixed_abs, tag = 'smem constant byte address 0x4 - core index']
  #allocation1 [shape = 'u32[144,128]{1,0:T(1,128)}', space=vmem, size = 0x12000, scoped, tag = 'internal scratch']
  #allocation2 [shape = 'f32[64,96]{1,0:T(8,128)}', space=vmem, size = 0x8000, scoped, tag = 'scratch operand']
  %s0 = inlined_call_operand.hbm [shape: bf16[8,8,32], index: 0, kind: input, shape index: {}]
  %s1 = inlined_call_operand.hbm [shape: f32[8,32], index: 1, kind: input, shape index: {}]
  %s2 = inlined_call_operand.vmem [shape: s32[8,1], index: 2, kind: input, shape index: {}]
  %s3 = inlined_call_operand.vmem [shape: bf16[32,96], index: 3, kind: input, shape index: {}]
  %s4 = inlined_call_operand.hbm [shape: bf16[32,96], index: 4, kind: input, shape index: {}]
  %s5 = inlined_call_operand.vmem [shape: f32[1,96], index: 5, kind: input, shape index: {}]
  %s6 = inlined_call_operand.vmem [shape: f32[1,96], index: 6, kind: input, shape index: {}]
  %s7 = inlined_call_operand.hbm [shape: bf16[8,8,32], index: 7, kind: output, shape index: {0}]
  %s8 = inlined_call_operand.hbm [shape: f32[8,32], index: 8, kind: output, shape index: {1}]
  %9 = xla_tuple %s7, %s8
  %s10 = sld [smem:[#allocation0]]
  $region62: #{tpu_custom_call.1} parent=0
    _
  %s12 = ssub.s32 1, %s10
  %s13 = scalar_select 0, %s12, %s10
  $region1: #{tpu_custom_call.1} parent=0
    #allocation3 [shape = 'u8[16384]{0}', space=vmem, size = 0x4000, scoped, tag = 'input window, operand 0, single buffered']
    #allocation4 [shape = 's32[1]{0}', space=sflag, size = 0x4, scoped, tag = 'scoped memory for tpu_custom_call.1']
    #allocation5 [shape = 's32[1]{0}', space=sflag, size = 0x4, scoped, tag = 'scoped memory for tpu_custom_call.1']
    #allocation6 [shape = 'u8[4096]{0}', space=vmem, size = 0x1000, scoped, tag = 'input window, operand 1, single buffered']
    #allocation7 [shape = 's32[1]{0}', space=sflag, size = 0x4, scoped, tag = 'scoped memory for tpu_custom_call.1']
    #allocation8 [shape = 'u8[8192]{0}', space=vmem, size = 0x2000, scoped, tag = 'input window, operand 4, single buffered']
    #allocation9 [shape = 'u8[16384]{0}', space=vmem, size = 0x4000, scoped, tag = 'output window, operand 0, single buffered']
    #allocation10 [shape = 'u8[4096]{0}', space=vmem, size = 0x1000, scoped, tag = 'output window, operand 1, single buffered']
    #allocation11 [shape = 's32[1]{0}', space=sflag, size = 0x4, scoped, tag = 'scoped memory for tpu_custom_call.1']
    %14 = vsyncpa [#allocation4], 0
    %15 = vsyncpa [#allocation7], 0
    %16 = vsyncpa [#allocation5], 0
    %17 = vsyncpa [#allocation11], 0
    // Predicated region
    $region2: #{tpu_custom_call.1} parent=1 // pred_check
      _
    $region3: #{tpu_custom_call.1} parent=1 // pred_check_branch
      %19 = sbr.rel (0) target = $region5
    $region4: #{tpu_custom_call.1} parent=1 // pred_region
      %s21 = ssub.s32 512, 512
      %22 = vsyncadd [#allocation4], %s21
      %s23 = sshll.u32 [#allocation3], 4
      %s24 = int_to_ptr.vmem [resolvable:$true] %s23
      %29 = dma.hbm_to_vmem [thread:$0]  %s0, 512, %s24, [#allocation4], 64, 64, 4
    $region5: #{tpu_custom_call.1} parent=1 // pred_fallthru
      _
    // Predicated region
    $region6: #{tpu_custom_call.1} parent=1 // pred_check
      _
    $region7: #{tpu_custom_call.1} parent=1 // pred_check_branch
      %31 = sbr.rel (0) target = $region9
    $region8: #{tpu_custom_call.1} parent=1 // pred_region
      %s33 = ssub.s32 128, 128
      %34 = vsyncadd [#allocation7], %s33
      %s36 = sshll.u32 [#allocation6], 4
      %s37 = int_to_ptr.vmem [resolvable:$true] %s36
      %39 = dma.hbm_to_vmem [thread:$0]  %s1, 128, %s37, [#allocation7]
    $region9: #{tpu_custom_call.1} parent=1 // pred_fallthru
      _
    // Predicated region
    $region10: #{tpu_custom_call.1} parent=1 // pred_check
      _
    $region11: #{tpu_custom_call.1} parent=1 // pred_check_branch
      %41 = sbr.rel (0) target = $region13
    $region12: #{tpu_custom_call.1} parent=1 // pred_region
      _
    $region13: #{tpu_custom_call.1} parent=1 // pred_fallthru
      _
    // Predicated region
    $region14: #{tpu_custom_call.1} parent=1 // pred_check
      _
    $region15: #{tpu_custom_call.1} parent=1 // pred_check_branch
      %43 = sbr.rel (0) target = $region17
    $region16: #{tpu_custom_call.1} parent=1 // pred_region
      _
    $region17: #{tpu_custom_call.1} parent=1 // pred_fallthru
      _
    // Predicated region
    $region18: #{tpu_custom_call.1} parent=1 // pred_check
      _
    $region19: #{tpu_custom_call.1} parent=1 // pred_check_branch
      %45 = sbr.rel (0) target = $region21
    $region20: #{tpu_custom_call.1} parent=1 // pred_region
      %s47 = ssub.s32 256, 256
      %48 = vsyncadd [#allocation7], %s47
      %s49 = sshll.u32 [#allocation8], 4
      %s50 = int_to_ptr.vmem [resolvable:$true] %s49
      %55 = dma.hbm_to_vmem [thread:$0]  %s4, 256, %s50, [#allocation7], 64, 64, 4
    $region21: #{tpu_custom_call.1} parent=1 // pred_fallthru
      _
    // Predicated region
    $region22: #{tpu_custom_call.1} parent=1 // pred_check
      _
    $region23: #{tpu_custom_call.1} parent=1 // pred_check_branch
      %57 = sbr.rel (0) target = $region25
    $region24: #{tpu_custom_call.1} parent=1 // pred_region
      _
    $region25: #{tpu_custom_call.1} parent=1 // pred_fallthru
      _
    // Predicated region
    $region26: #{tpu_custom_call.1} parent=1 // pred_check
      _
    $region27: #{tpu_custom_call.1} parent=1 // pred_check_branch
      %59 = sbr.rel (0) target = $region29
    $region28: #{tpu_custom_call.1} parent=1 // pred_region
      _
    $region29: #{tpu_custom_call.1} parent=1 // pred_fallthru
      _
    // Predicated region
    $region30: #{tpu_custom_call.1} parent=1 // pred_check
      _
    $region31: #{tpu_custom_call.1} parent=1 // pred_check_branch
      %61 = sbr.rel (0) target = $region33
    $region32: #{tpu_custom_call.1} parent=1 // pred_region
      %62 = dma.done [#allocation4], 512
    $region33: #{tpu_custom_call.1} parent=1 // pred_fallthru
      _
    // Predicated region
    $region34: #{tpu_custom_call.1} parent=1 // pred_check
      _
    $region35: #{tpu_custom_call.1} parent=1 // pred_check_branch
      %64 = sbr.rel (0) target = $region37
    $region36: #{tpu_custom_call.1} parent=1 // pred_region
      %65 = dma.done [#allocation7], 128
    $region37: #{tpu_custom_call.1} parent=1 // pred_fallthru
      _
    // Predicated region
    $region38: #{tpu_custom_call.1} parent=1 // pred_check
      _
    $region39: #{tpu_custom_call.1} parent=1 // pred_check_branch
      %67 = sbr.rel (0) target = $region41
    $region40: #{tpu_custom_call.1} parent=1 // pred_region
      %68 = dma.done [#allocation7], 256
    $region41: #{tpu_custom_call.1} parent=1 // pred_fallthru
      _
    %p70 = scmp.eq.s32.totalorder 0, 0
    // Predicated region
    $region42: #{tpu_custom_call.1} parent=1 // pred_check
      %p71 = pneg %p70
    $region43: #{tpu_custom_call.1} parent=1 // pred_check_branch
      %73 = sbr.rel (%p71) target = $region45
    $region44: #{tpu_custom_call.1} parent=1 // pred_region
      %v74 = vld [vmem:[#allocation6] sm:$0xff]
      %vm75 = vcmask 261120
      %76 = vst.msk [vmem:[#allocation10] sm:$0xff] %vm75, %v74
    $region45: #{tpu_custom_call.1} parent=1 // pred_fallthru
      _
    %v77 = vld [vmem:[#allocation3] sm:$0xf]
    %v78 = vld [vmem:[#allocation3 + $0x4] sm:$0xf]
    %v79 = vld [vmem:[#allocation3 + $0x8] sm:$0xf]
    %v80 = vld [vmem:[#allocation3 + $0xc] sm:$0xf]
    %v81 = vld [vmem:[#allocation3 + $0x10] sm:$0xf]
    %v82 = vld [vmem:[#allocation3 + $0x14] sm:$0xf]
    %v83 = vld [vmem:[#allocation3 + $0x18] sm:$0xf]
    %v84 = vld [vmem:[#allocation3 + $0x1c] sm:$0xf]
    %v85 = vld [vmem:[%s3] sm:$0xf]
    %v86 = vld [vmem:[%s3 + $0x4] sm:$0xf]
    %v87 = vld [vmem:[%s3 + $0x8] sm:$0xf]
    %v88 = vld [vmem:[%s3 + $0xc] sm:$0xf]
    %v89 = vld [vmem:[%s5] sm:$0x1]
    %v91 = vlaneseq
    %v92 = vshrl.u32 %v91, 7
    %v93 = vsub.s32 0, %v92
    %v94 = vrot.slane %v89, %v93
    %v104 = vunpack.c.l.b16 %v77
    %v105 = vunpack.c.l.b16 %v78
    %v106 = vunpack.c.l.b16 %v79
    %v107 = vunpack.c.l.b16 %v80
    %v108 = vunpack.c.l.b16 %v81
    %v109 = vunpack.c.l.b16 %v82
    %v110 = vunpack.c.l.b16 %v83
    %v111 = vunpack.c.l.b16 %v84
    %v112 = vpack.c.b16 %v105, %v104
    %v113 = vpack.c.b16 %v107, %v106
    %v114 = vpack.c.b16 %v109, %v108
    %v115 = vpack.c.b16 %v111, %v110
    %v120 = vunpack.c.l.b16 %v85
    %v121 = vunpack.c.l.b16 %v86
    %v122 = vunpack.c.l.b16 %v87
    %v123 = vunpack.c.l.b16 %v88
    %v124 = vpack.c.b16 %v121, %v120
    %v125 = vpack.c.b16 %v123, %v122
    %vm128 = vcmask 261120
    %v130 = vsel %vm128, %v112, 0
    %v133 = vsel %vm128, %v113, 0
    %v136 = vsel %vm128, %v114, 0
    %v139 = vsel %vm128, %v115, 0
    %141 = vmatprep.subr.bf16.mxu0 0
    %142 = vmatpush1.bf16.msra.mxu0 %v124
    %143 = vmatprep.subr.bf16.mxu0 0
    %144 = vmatpush1.bf16.msra.mxu0 %v125
    %145 = vmatprep.subr.bf16.mxu0 0
    %146 = vmatpush1.bf16.msra.mxu0 0
    %147 = vmatprep.subr.bf16.mxu0 0
    %148 = vmatpush1.bf16.msra.mxu0 0
    %149 = vmatprep.subr.bf16.mxu0 0
    %150 = vmatpush1.bf16.msra.mxu0 0
    %151 = vmatprep.subr.bf16.mxu0 0
    %152 = vmatpush1.bf16.msra.mxu0 0
    %153 = vmatprep.subr.bf16.mxu0 0
    %154 = vmatpush1.bf16.msra.mxu0 0
    %155 = vmatprep.subr.bf16.mxu0 0
    %156 = vmatpush1.bf16.msra.mxu0 0
    %157 = vmatprep.subr.bf16.mxu0 0
    %158 = vmatpush1.bf16.msra.mxu0 0
    %159 = vmatprep.subr.bf16.mxu0 0
    %160 = vmatpush1.bf16.msra.mxu0 0
    %161 = vmatprep.subr.bf16.mxu0 0
    %162 = vmatpush1.bf16.msra.mxu0 0
    %163 = vmatprep.subr.bf16.mxu0 0
    %164 = vmatpush1.bf16.msra.mxu0 0
    %165 = vmatprep.subr.bf16.mxu0 0
    %166 = vmatpush1.bf16.msra.mxu0 0
    %167 = vmatprep.subr.bf16.mxu0 0
    %168 = vmatpush1.bf16.msra.mxu0 0
    %169 = vmatprep.subr.bf16.mxu0 0
    %170 = vmatpush1.bf16.msra.mxu0 0
    %171 = vmatprep.subr.bf16.mxu0 0
    %172 = vmatpush1.bf16.msra.mxu0 0
    %173 = vmatprep.mubr.bf16.mxu0 0
    %174 = vmatmul.mubr.bf16.gmra.mrb[0].mxu0 %v130
    %v175 = vpop.f32.mrb[0].mxu0
    %v176 = vadd.f32 %v94, %v175
    %v177 = vpop.f32.mrb[0].mxu0
    %v178 = vpop.f32.mrb[0].mxu0
    %v179 = vadd.f32 %v94, %v178
    %v180 = vpop.f32.mrb[0].mxu0
    %181 = vmatprep.mubr.bf16.mxu0 0
    %182 = vmatmul.mubr.bf16.gmra.mrb[0].mxu0 %v133
    %v183 = vpop.f32.mrb[0].mxu0
    %v184 = vadd.f32 %v94, %v183
    %v185 = vpop.f32.mrb[0].mxu0
    %v186 = vpop.f32.mrb[0].mxu0
    %v187 = vadd.f32 %v94, %v186
    %v188 = vpop.f32.mrb[0].mxu0
    %189 = vmatprep.mubr.bf16.mxu0 0
    %190 = vmatmul.mubr.bf16.gmra.mrb[0].mxu0 %v136
    %v191 = vpop.f32.mrb[0].mxu0
    %v192 = vadd.f32 %v94, %v191
    %v193 = vpop.f32.mrb[0].mxu0
    %v194 = vpop.f32.mrb[0].mxu0
    %v195 = vadd.f32 %v94, %v194
    %v196 = vpop.f32.mrb[0].mxu0
    %197 = vmatprep.mubr.bf16.mxu0 0
    %198 = vmatmul.mubr.bf16.gmra.mrb[0].mxu0 %v139
    %v199 = vpop.f32.mrb[0].mxu0
    %v200 = vadd.f32 %v94, %v199
    %v201 = vpop.f32.mrb[0].mxu0
    %v202 = vpop.f32.mrb[0].mxu0
    %v203 = vadd.f32 %v94, %v202
    %v204 = vpop.f32.mrb[0].mxu0
    %205 = vdwg.mxu0
    %vm206 = vcmask 785408
    %207 = vst.msk [vmem:[#allocation2] sm:$0xff] %vm206, %v176
    %208 = vst.msk [vmem:[#allocation2 + $0x8] sm:$0xff] %vm206, %v179
    %209 = vst.msk [vmem:[#allocation2 + $0x10] sm:$0xff] %vm206, %v184
    %210 = vst.msk [vmem:[#allocation2 + $0x18] sm:$0xff] %vm206, %v187
    %211 = vst.msk [vmem:[#allocation2 + $0x20] sm:$0xff] %vm206, %v192
    %212 = vst.msk [vmem:[#allocation2 + $0x28] sm:$0xff] %vm206, %v195
    %213 = vst.msk [vmem:[#allocation2 + $0x30] sm:$0xff] %vm206, %v200
    %214 = vst.msk [vmem:[#allocation2 + $0x38] sm:$0xff] %vm206, %v203
    %v215 = vld [vmem:[#allocation8] sm:$0xf]
    %v216 = vld [vmem:[#allocation8 + $0x4] sm:$0xf]
    %v217 = vld [vmem:[#allocation8 + $0x8] sm:$0xf]
    %v218 = vld [vmem:[#allocation8 + $0xc] sm:$0xf]
    %v219 = vld [vmem:[%s6] sm:$0x1]
    %v220 = vld [vmem:[%s2] sm:$0xff]
    %s221 = smul.u32 0, 8
    %v222 = vld [vmem:[#allocation10] sm:$0xff]
    %v223 = vld [vmem:[#allocation2] sm:$0xff]
    %v224 = vpack.c.bf16 %v222, %v222
    %v226 = vlaneseq
    %v227 = vshrl.u32 %v226, 7
    %v228 = vsub.s32 0, %v227
    %v229 = vrot.slane %v219, %v228
    %v235 = vunpack.c.l.b16 %v215
    %v236 = vunpack.c.l.b16 %v216
    %v237 = vunpack.c.l.b16 %v217
    %v238 = vunpack.c.l.b16 %v218
    %v239 = vpack.c.b16 %v236, %v235
    %v240 = vpack.c.b16 %v238, %v237
    %v244 = vsel %vm128, %v224, 0
    %246 = vmatprep.subr.bf16.mxu0 0
    %247 = vmatpush1.bf16.msra.mxu0 %v239
    %248 = vmatprep.subr.bf16.mxu0 0
    %249 = vmatpush1.bf16.msra.mxu0 %v240
    %250 = vmatprep.subr.bf16.mxu0 0
    %251 = vmatpush1.bf16.msra.mxu0 0
    %252 = vmatprep.subr.bf16.mxu0 0
    %253 = vmatpush1.bf16.msra.mxu0 0
    %254 = vmatprep.subr.bf16.mxu0 0
    %255 = vmatpush1.bf16.msra.mxu0 0
    %256 = vmatprep.subr.bf16.mxu0 0
    %257 = vmatpush1.bf16.msra.mxu0 0
    %258 = vmatprep.subr.bf16.mxu0 0
    %259 = vmatpush1.bf16.msra.mxu0 0
    %260 = vmatprep.subr.bf16.mxu0 0
    %261 = vmatpush1.bf16.msra.mxu0 0
    %262 = vmatprep.subr.bf16.mxu0 0
    %263 = vmatpush1.bf16.msra.mxu0 0
    %264 = vmatprep.subr.bf16.mxu0 0
    %265 = vmatpush1.bf16.msra.mxu0 0
    %266 = vmatprep.subr.bf16.mxu0 0
    %267 = vmatpush1.bf16.msra.mxu0 0
    %268 = vmatprep.subr.bf16.mxu0 0
    %269 = vmatpush1.bf16.msra.mxu0 0
    %270 = vmatprep.subr.bf16.mxu0 0
    %271 = vmatpush1.bf16.msra.mxu0 0
    %272 = vmatprep.subr.bf16.mxu0 0
    %273 = vmatpush1.bf16.msra.mxu0 0
    %274 = vmatprep.subr.bf16.mxu0 0
    %275 = vmatpush1.bf16.msra.mxu0 0
    %276 = vmatprep.subr.bf16.mxu0 0
    %277 = vmatpush1.bf16.msra.mxu0 0
    %278 = vmatprep.mubr.bf16.mxu0 0
    %279 = vmatmul.mubr.bf16.gmra.mrb[0].mxu0 %v244
    %v280 = vpop.f32.mrb[0].mxu0
    %v281 = vadd.f32 %v229, %v280
    %v282 = vpop.f32.mrb[0].mxu0
    %v283 = vpop.f32.mrb[0].mxu0
    %v284 = vpop.f32.mrb[0].mxu0
    %285 = vdwg.mxu0
    %v286 = vadd.f32 %v223, %v281
    %v287 = vxor.u32 %v286, 2147483648
    %v288 = vmul.f32 %v287, 1.442695
    %v289 = vpow.pop %v288
    %v290 = vadd.f32 %v289, 1.0
    %v291 = vrcp.pop %v290
    %v292 = vmul.f32 1.0, %v291
    %294 = vrot.lane.b32.xlu0 %v281, 64
    %v295 = vpop.permute.xlu0 %294
    %v297 = vmul.f32 %v292, %v295
    %299 = vrot.lane.b32.xlu0 %v297, 64
    %v300 = vpop.permute.xlu0 %299
    %v302 = vadd.f32 %v223, %v300
    %v303 = vtanh.pop %v302
    %v304 = vsub.f32 1.0, %v292
    %306 = vrot.lane.b32.xlu0 %v303, 96
    %v307 = vpop.permute.xlu0 %306
    %v309 = vmul.f32 %v304, %v307
    %311 = vrot.lane.b32.xlu0 %v222, 32
    %v312 = vpop.permute.xlu0 %311
    %v314 = vmul.f32 %v292, %v312
    %v315 = vadd.f32 %v309, %v314
    %v316 = vstv %s221
    %vm317 = vcmp.gt.s32.totalorder %v220, %v316
    %v318 = vsel %vm317, 1, 0
    %319 = vset.pattern.permute.xlu0 0
    %320 = vperm.xlu0 %319, %v318
    %v321 = vpop.permute.xlu0 %320
    %vm322 = vcmp.eq.s32.totalorder %v321, 1
    %v323 = vsel %vm322, %v315, 0.0
    %v324 = vpack.c.bf16 %v323, %v323
    %v326 = vunpack.c.l.b16 %v324
    %v327 = vpack.c.b16 %v326, %v326
    %328 = vrot.lane.b32.xlu0 %v327, 96
    %v329 = vpop.permute.xlu0 %328
    %vm331 = vcmask 257024
    %332 = vst.msk [vmem:[#allocation9] sm:$0xf] %vm331, %v329
    %v333 = vsel %vm322, %v315, %v312
    %s334 = scalar_lea.vmem [#allocation2], 8
    %v335 = vld [vmem:[%s334] sm:$0xff]
    %v336 = vpack.c.bf16 %v333, %v333
    %338 = vrot.lane.b32.xlu0 %v336, 96
    %v339 = vpop.permute.xlu0 %338
    %v341 = vsel %vm128, %v339, 0
    %343 = vmatprep.subr.bf16.mxu0 0
    %344 = vmatpush1.bf16.msra.mxu0 %v239
    %345 = vmatprep.subr.bf16.mxu0 0
    %346 = vmatpush1.bf16.msra.mxu0 %v240
    %347 = vmatprep.subr.bf16.mxu0 0
    %348 = vmatpush1.bf16.msra.mxu0 0
    %349 = vmatprep.subr.bf16.mxu0 0
    %350 = vmatpush1.bf16.msra.mxu0 0
    %351 = vmatprep.subr.bf16.mxu0 0
    %352 = vmatpush1.bf16.msra.mxu0 0
    %353 = vmatprep.subr.bf16.mxu0 0
    %354 = vmatpush1.bf16.msra.mxu0 0
    %355 = vmatprep.subr.bf16.mxu0 0
    %356 = vmatpush1.bf16.msra.mxu0 0
    %357 = vmatprep.subr.bf16.mxu0 0
    %358 = vmatpush1.bf16.msra.mxu0 0
    %359 = vmatprep.subr.bf16.mxu0 0
    %360 = vmatpush1.bf16.msra.mxu0 0
    %361 = vmatprep.subr.bf16.mxu0 0
    %362 = vmatpush1.bf16.msra.mxu0 0
    %363 = vmatprep.subr.bf16.mxu0 0
    %364 = vmatpush1.bf16.msra.mxu0 0
    %365 = vmatprep.subr.bf16.mxu0 0
    %366 = vmatpush1.bf16.msra.mxu0 0
    %367 = vmatprep.subr.bf16.mxu0 0
    %368 = vmatpush1.bf16.msra.mxu0 0
    %369 = vmatprep.subr.bf16.mxu0 0
    %370 = vmatpush1.bf16.msra.mxu0 0
    %371 = vmatprep.subr.bf16.mxu0 0
    %372 = vmatpush1.bf16.msra.mxu0 0
    %373 = vmatprep.subr.bf16.mxu0 0
    %374 = vmatpush1.bf16.msra.mxu0 0
    %375 = vmatprep.mubr.bf16.mxu0 0
    %376 = vmatmul.mubr.bf16.gmra.mrb[0].mxu0 %v341
    %v377 = vpop.f32.mrb[0].mxu0
    %v378 = vadd.f32 %v229, %v377
    %v379 = vpop.f32.mrb[0].mxu0
    %v380 = vpop.f32.mrb[0].mxu0
    %v381 = vpop.f32.mrb[0].mxu0
    %382 = vdwg.mxu0
    %v383 = vadd.f32 %v335, %v378
    %v384 = vxor.u32 %v383, 2147483648
    %v385 = vmul.f32 %v384, 1.442695
    %v386 = vpow.pop %v385
    %v387 = vadd.f32 %v386, 1.0
    %v388 = vrcp.pop %v387
    %v389 = vmul.f32 1.0, %v388
    %391 = vrot.lane.b32.xlu0 %v378, 64
    %v392 = vpop.permute.xlu0 %391
    %v394 = vmul.f32 %v389, %v392
    %396 = vrot.lane.b32.xlu0 %v394, 64
    %v397 = vpop.permute.xlu0 %396
    %v399 = vadd.f32 %v335, %v397
    %v400 = vtanh.pop %v399
    %v401 = vsub.f32 1.0, %v389
    %403 = vrot.lane.b32.xlu0 %v400, 96
    %v404 = vpop.permute.xlu0 %403
    %v406 = vmul.f32 %v401, %v404
    %v407 = vmul.f32 %v389, %v333
    %v408 = vadd.f32 %v406, %v407
    %s409 = sadd.s32 %s221, 1
    %v410 = vstv %s409
    %vm411 = vcmp.gt.s32.totalorder %v220, %v410
    %v412 = vsel %vm411, 1, 0
    %413 = vset.pattern.permute.xlu0 0
    %414 = vperm.xlu0 %413, %v412
    %v415 = vpop.permute.xlu0 %414
    %vm416 = vcmp.eq.s32.totalorder %v415, 1
    %v417 = vsel %vm416, %v408, 0.0
    %v418 = vpack.c.bf16 %v417, %v417
    %v420 = vunpack.c.l.b16 %v418
    %v421 = vpack.c.b16 %v420, %v420
    %422 = vrot.lane.b32.xlu0 %v421, 96
    %v423 = vpop.permute.xlu0 %422
    %s425 = scalar_lea.vmem [#allocation9], 4
    %426 = vst.msk [vmem:[%s425] sm:$0xf] %vm331, %v423
    %v427 = vsel %vm416, %v408, %v333
    %s428 = scalar_lea.vmem [#allocation2], 16
    %v429 = vld [vmem:[%s428] sm:$0xff]
    %v430 = vpack.c.bf16 %v427, %v427
    %432 = vrot.lane.b32.xlu0 %v430, 96
    %v433 = vpop.permute.xlu0 %432
    %v435 = vsel %vm128, %v433, 0
    %437 = vmatprep.subr.bf16.mxu0 0
    %438 = vmatpush1.bf16.msra.mxu0 %v239
    %439 = vmatprep.subr.bf16.mxu0 0
    %440 = vmatpush1.bf16.msra.mxu0 %v240
    %441 = vmatprep.subr.bf16.mxu0 0
    %442 = vmatpush1.bf16.msra.mxu0 0
    %443 = vmatprep.subr.bf16.mxu0 0
    %444 = vmatpush1.bf16.msra.mxu0 0
    %445 = vmatprep.subr.bf16.mxu0 0
    %446 = vmatpush1.bf16.msra.mxu0 0
    %447 = vmatprep.subr.bf16.mxu0 0
    %448 = vmatpush1.bf16.msra.mxu0 0
    %449 = vmatprep.subr.bf16.mxu0 0
    %450 = vmatpush1.bf16.msra.mxu0 0
    %451 = vmatprep.subr.bf16.mxu0 0
    %452 = vmatpush1.bf16.msra.mxu0 0
    %453 = vmatprep.subr.bf16.mxu0 0
    %454 = vmatpush1.bf16.msra.mxu0 0
    %455 = vmatprep.subr.bf16.mxu0 0
    %456 = vmatpush1.bf16.msra.mxu0 0
    %457 = vmatprep.subr.bf16.mxu0 0
    %458 = vmatpush1.bf16.msra.mxu0 0
    %459 = vmatprep.subr.bf16.mxu0 0
    %460 = vmatpush1.bf16.msra.mxu0 0
    %461 = vmatprep.subr.bf16.mxu0 0
    %462 = vmatpush1.bf16.msra.mxu0 0
    %463 = vmatprep.subr.bf16.mxu0 0
    %464 = vmatpush1.bf16.msra.mxu0 0
    %465 = vmatprep.subr.bf16.mxu0 0
    %466 = vmatpush1.bf16.msra.mxu0 0
    %467 = vmatprep.subr.bf16.mxu0 0
    %468 = vmatpush1.bf16.msra.mxu0 0
    %469 = vmatprep.mubr.bf16.mxu0 0
    %470 = vmatmul.mubr.bf16.gmra.mrb[0].mxu0 %v435
    %v471 = vpop.f32.mrb[0].mxu0
    %v472 = vadd.f32 %v229, %v471
    %v473 = vpop.f32.mrb[0].mxu0
    %v474 = vpop.f32.mrb[0].mxu0
    %v475 = vpop.f32.mrb[0].mxu0
    %476 = vdwg.mxu0
    %v477 = vadd.f32 %v429, %v472
    %v478 = vxor.u32 %v477, 2147483648
    %v479 = vmul.f32 %v478, 1.442695
    %v480 = vpow.pop %v479
    %v481 = vadd.f32 %v480, 1.0
    %v482 = vrcp.pop %v481
    %v483 = vmul.f32 1.0, %v482
    %485 = vrot.lane.b32.xlu0 %v472, 64
    %v486 = vpop.permute.xlu0 %485
    %v488 = vmul.f32 %v483, %v486
    %490 = vrot.lane.b32.xlu0 %v488, 64
    %v491 = vpop.permute.xlu0 %490
    %v493 = vadd.f32 %v429, %v491
    %v494 = vtanh.pop %v493
    %v495 = vsub.f32 1.0, %v483
    %497 = vrot.lane.b32.xlu0 %v494, 96
    %v498 = vpop.permute.xlu0 %497
    %v500 = vmul.f32 %v495, %v498
    %v501 = vmul.f32 %v483, %v427
    %v502 = vadd.f32 %v500, %v501
    %s503 = sadd.s32 %s221, 2
    %v504 = vstv %s503
    %vm505 = vcmp.gt.s32.totalorder %v220, %v504
    %v506 = vsel %vm505, 1, 0
    %507 = vset.pattern.permute.xlu0 0
    %508 = vperm.xlu0 %507, %v506
    %v509 = vpop.permute.xlu0 %508
    %vm510 = vcmp.eq.s32.totalorder %v509, 1
    %v511 = vsel %vm510, %v502, 0.0
    %v512 = vpack.c.bf16 %v511, %v511
    %v514 = vunpack.c.l.b16 %v512
    %v515 = vpack.c.b16 %v514, %v514
    %516 = vrot.lane.b32.xlu0 %v515, 96
    %v517 = vpop.permute.xlu0 %516
    %s519 = scalar_lea.vmem [#allocation9], 8
    %520 = vst.msk [vmem:[%s519] sm:$0xf] %vm331, %v517
    %v521 = vsel %vm510, %v502, %v427
    %s522 = scalar_lea.vmem [#allocation2], 24
    %v523 = vld [vmem:[%s522] sm:$0xff]
    %v524 = vpack.c.bf16 %v521, %v521
    %526 = vrot.lane.b32.xlu0 %v524, 96
    %v527 = vpop.permute.xlu0 %526
    %v529 = vsel %vm128, %v527, 0
    %531 = vmatprep.subr.bf16.mxu0 0
    %532 = vmatpush1.bf16.msra.mxu0 %v239
    %533 = vmatprep.subr.bf16.mxu0 0
    %534 = vmatpush1.bf16.msra.mxu0 %v240
    %535 = vmatprep.subr.bf16.mxu0 0
    %536 = vmatpush1.bf16.msra.mxu0 0
    %537 = vmatprep.subr.bf16.mxu0 0
    %538 = vmatpush1.bf16.msra.mxu0 0
    %539 = vmatprep.subr.bf16.mxu0 0
    %540 = vmatpush1.bf16.msra.mxu0 0
    %541 = vmatprep.subr.bf16.mxu0 0
    %542 = vmatpush1.bf16.msra.mxu0 0
    %543 = vmatprep.subr.bf16.mxu0 0
    %544 = vmatpush1.bf16.msra.mxu0 0
    %545 = vmatprep.subr.bf16.mxu0 0
    %546 = vmatpush1.bf16.msra.mxu0 0
    %547 = vmatprep.subr.bf16.mxu0 0
    %548 = vmatpush1.bf16.msra.mxu0 0
    %549 = vmatprep.subr.bf16.mxu0 0
    %550 = vmatpush1.bf16.msra.mxu0 0
    %551 = vmatprep.subr.bf16.mxu0 0
    %552 = vmatpush1.bf16.msra.mxu0 0
    %553 = vmatprep.subr.bf16.mxu0 0
    %554 = vmatpush1.bf16.msra.mxu0 0
    %555 = vmatprep.subr.bf16.mxu0 0
    %556 = vmatpush1.bf16.msra.mxu0 0
    %557 = vmatprep.subr.bf16.mxu0 0
    %558 = vmatpush1.bf16.msra.mxu0 0
    %559 = vmatprep.subr.bf16.mxu0 0
    %560 = vmatpush1.bf16.msra.mxu0 0
    %561 = vmatprep.subr.bf16.mxu0 0
    %562 = vmatpush1.bf16.msra.mxu0 0
    %563 = vmatprep.mubr.bf16.mxu0 0
    %564 = vmatmul.mubr.bf16.gmra.mrb[0].mxu0 %v529
    %v565 = vpop.f32.mrb[0].mxu0
    %v566 = vadd.f32 %v229, %v565
    %v567 = vpop.f32.mrb[0].mxu0
    %v568 = vpop.f32.mrb[0].mxu0
    %v569 = vpop.f32.mrb[0].mxu0
    %570 = vdwg.mxu0
    %v571 = vadd.f32 %v523, %v566
    %v572 = vxor.u32 %v571, 2147483648
    %v573 = vmul.f32 %v572, 1.442695
    %v574 = vpow.pop %v573
    %v575 = vadd.f32 %v574, 1.0
    %v576 = vrcp.pop %v575
    %v577 = vmul.f32 1.0, %v576
    %579 = vrot.lane.b32.xlu0 %v566, 64
    %v580 = vpop.permute.xlu0 %579
    %v582 = vmul.f32 %v577, %v580
    %584 = vrot.lane.b32.xlu0 %v582, 64
    %v585 = vpop.permute.xlu0 %584
    %v587 = vadd.f32 %v523, %v585
    %v588 = vtanh.pop %v587
    %v589 = vsub.f32 1.0, %v577
    %591 = vrot.lane.b32.xlu0 %v588, 96
    %v592 = vpop.permute.xlu0 %591
    %v594 = vmul.f32 %v589, %v592
    %v595 = vmul.f32 %v577, %v521
    %v596 = vadd.f32 %v594, %v595
    %s597 = sadd.s32 %s221, 3
    %v598 = vstv %s597
    %vm599 = vcmp.gt.s32.totalorder %v220, %v598
    %v600 = vsel %vm599, 1, 0
    %601 = vset.pattern.permute.xlu0 0
    %602 = vperm.xlu0 %601, %v600
    %v603 = vpop.permute.xlu0 %602
    %vm604 = vcmp.eq.s32.totalorder %v603, 1
    %v605 = vsel %vm604, %v596, 0.0
    %v606 = vpack.c.bf16 %v605, %v605
    %v608 = vunpack.c.l.b16 %v606
    %v609 = vpack.c.b16 %v608, %v608
    %610 = vrot.lane.b32.xlu0 %v609, 96
    %v611 = vpop.permute.xlu0 %610
    %s613 = scalar_lea.vmem [#allocation9], 12
    %614 = vst.msk [vmem:[%s613] sm:$0xf] %vm331, %v611
    %v615 = vsel %vm604, %v596, %v521
    %s616 = scalar_lea.vmem [#allocation2], 32
    %v617 = vld [vmem:[%s616] sm:$0xff]
    %v618 = vpack.c.bf16 %v615, %v615
    %620 = vrot.lane.b32.xlu0 %v618, 96
    %v621 = vpop.permute.xlu0 %620
    %v623 = vsel %vm128, %v621, 0
    %625 = vmatprep.subr.bf16.mxu0 0
    %626 = vmatpush1.bf16.msra.mxu0 %v239
    %627 = vmatprep.subr.bf16.mxu0 0
    %628 = vmatpush1.bf16.msra.mxu0 %v240
    %629 = vmatprep.subr.bf16.mxu0 0
    %630 = vmatpush1.bf16.msra.mxu0 0
    %631 = vmatprep.subr.bf16.mxu0 0
    %632 = vmatpush1.bf16.msra.mxu0 0
    %633 = vmatprep.subr.bf16.mxu0 0
    %634 = vmatpush1.bf16.msra.mxu0 0
    %635 = vmatprep.subr.bf16.mxu0 0
    %636 = vmatpush1.bf16.msra.mxu0 0
    %637 = vmatprep.subr.bf16.mxu0 0
    %638 = vmatpush1.bf16.msra.mxu0 0
    %639 = vmatprep.subr.bf16.mxu0 0
    %640 = vmatpush1.bf16.msra.mxu0 0
    %641 = vmatprep.subr.bf16.mxu0 0
    %642 = vmatpush1.bf16.msra.mxu0 0
    %643 = vmatprep.subr.bf16.mxu0 0
    %644 = vmatpush1.bf16.msra.mxu0 0
    %645 = vmatprep.subr.bf16.mxu0 0
    %646 = vmatpush1.bf16.msra.mxu0 0
    %647 = vmatprep.subr.bf16.mxu0 0
    %648 = vmatpush1.bf16.msra.mxu0 0
    %649 = vmatprep.subr.bf16.mxu0 0
    %650 = vmatpush1.bf16.msra.mxu0 0
    %651 = vmatprep.subr.bf16.mxu0 0
    %652 = vmatpush1.bf16.msra.mxu0 0
    %653 = vmatprep.subr.bf16.mxu0 0
    %654 = vmatpush1.bf16.msra.mxu0 0
    %655 = vmatprep.subr.bf16.mxu0 0
    %656 = vmatpush1.bf16.msra.mxu0 0
    %657 = vmatprep.mubr.bf16.mxu0 0
    %658 = vmatmul.mubr.bf16.gmra.mrb[0].mxu0 %v623
    %v659 = vpop.f32.mrb[0].mxu0
    %v660 = vadd.f32 %v229, %v659
    %v661 = vpop.f32.mrb[0].mxu0
    %v662 = vpop.f32.mrb[0].mxu0
    %v663 = vpop.f32.mrb[0].mxu0
    %664 = vdwg.mxu0
    %v665 = vadd.f32 %v617, %v660
    %v666 = vxor.u32 %v665, 2147483648
    %v667 = vmul.f32 %v666, 1.442695
    %v668 = vpow.pop %v667
    %v669 = vadd.f32 %v668, 1.0
    %v670 = vrcp.pop %v669
    %v671 = vmul.f32 1.0, %v670
    %673 = vrot.lane.b32.xlu0 %v660, 64
    %v674 = vpop.permute.xlu0 %673
    %v676 = vmul.f32 %v671, %v674
    %678 = vrot.lane.b32.xlu0 %v676, 64
    %v679 = vpop.permute.xlu0 %678
    %v681 = vadd.f32 %v617, %v679
    %v682 = vtanh.pop %v681
    %v683 = vsub.f32 1.0, %v671
    %685 = vrot.lane.b32.xlu0 %v682, 96
    %v686 = vpop.permute.xlu0 %685
    %v688 = vmul.f32 %v683, %v686
    %v689 = vmul.f32 %v671, %v615
    %v690 = vadd.f32 %v688, %v689
    %s691 = sadd.s32 %s221, 4
    %v692 = vstv %s691
    %vm693 = vcmp.gt.s32.totalorder %v220, %v692
    %v694 = vsel %vm693, 1, 0
    %695 = vset.pattern.permute.xlu0 0
    %696 = vperm.xlu0 %695, %v694
    %v697 = vpop.permute.xlu0 %696
    %vm698 = vcmp.eq.s32.totalorder %v697, 1
    %v699 = vsel %vm698, %v690, 0.0
    %v700 = vpack.c.bf16 %v699, %v699
    %v702 = vunpack.c.l.b16 %v700
    %v703 = vpack.c.b16 %v702, %v702
    %704 = vrot.lane.b32.xlu0 %v703, 96
    %v705 = vpop.permute.xlu0 %704
    %s707 = scalar_lea.vmem [#allocation9], 16
    %708 = vst.msk [vmem:[%s707] sm:$0xf] %vm331, %v705
    %v709 = vsel %vm698, %v690, %v615
    %s710 = scalar_lea.vmem [#allocation2], 40
    %v711 = vld [vmem:[%s710] sm:$0xff]
    %v712 = vpack.c.bf16 %v709, %v709
    %714 = vrot.lane.b32.xlu0 %v712, 96
    %v715 = vpop.permute.xlu0 %714
    %v717 = vsel %vm128, %v715, 0
    %719 = vmatprep.subr.bf16.mxu0 0
    %720 = vmatpush1.bf16.msra.mxu0 %v239
    %721 = vmatprep.subr.bf16.mxu0 0
    %722 = vmatpush1.bf16.msra.mxu0 %v240
    %723 = vmatprep.subr.bf16.mxu0 0
    %724 = vmatpush1.bf16.msra.mxu0 0
    %725 = vmatprep.subr.bf16.mxu0 0
    %726 = vmatpush1.bf16.msra.mxu0 0
    %727 = vmatprep.subr.bf16.mxu0 0
    %728 = vmatpush1.bf16.msra.mxu0 0
    %729 = vmatprep.subr.bf16.mxu0 0
    %730 = vmatpush1.bf16.msra.mxu0 0
    %731 = vmatprep.subr.bf16.mxu0 0
    %732 = vmatpush1.bf16.msra.mxu0 0
    %733 = vmatprep.subr.bf16.mxu0 0
    %734 = vmatpush1.bf16.msra.mxu0 0
    %735 = vmatprep.subr.bf16.mxu0 0
    %736 = vmatpush1.bf16.msra.mxu0 0
    %737 = vmatprep.subr.bf16.mxu0 0
    %738 = vmatpush1.bf16.msra.mxu0 0
    %739 = vmatprep.subr.bf16.mxu0 0
    %740 = vmatpush1.bf16.msra.mxu0 0
    %741 = vmatprep.subr.bf16.mxu0 0
    %742 = vmatpush1.bf16.msra.mxu0 0
    %743 = vmatprep.subr.bf16.mxu0 0
    %744 = vmatpush1.bf16.msra.mxu0 0
    %745 = vmatprep.subr.bf16.mxu0 0
    %746 = vmatpush1.bf16.msra.mxu0 0
    %747 = vmatprep.subr.bf16.mxu0 0
    %748 = vmatpush1.bf16.msra.mxu0 0
    %749 = vmatprep.subr.bf16.mxu0 0
    %750 = vmatpush1.bf16.msra.mxu0 0
    %751 = vmatprep.mubr.bf16.mxu0 0
    %752 = vmatmul.mubr.bf16.gmra.mrb[0].mxu0 %v717
    %v753 = vpop.f32.mrb[0].mxu0
    %v754 = vadd.f32 %v229, %v753
    %v755 = vpop.f32.mrb[0].mxu0
    %v756 = vpop.f32.mrb[0].mxu0
    %v757 = vpop.f32.mrb[0].mxu0
    %758 = vdwg.mxu0
    %v759 = vadd.f32 %v711, %v754
    %v760 = vxor.u32 %v759, 2147483648
    %v761 = vmul.f32 %v760, 1.442695
    %v762 = vpow.pop %v761
    %v763 = vadd.f32 %v762, 1.0
    %v764 = vrcp.pop %v763
    %v765 = vmul.f32 1.0, %v764
    %767 = vrot.lane.b32.xlu0 %v754, 64
    %v768 = vpop.permute.xlu0 %767
    %v770 = vmul.f32 %v765, %v768
    %772 = vrot.lane.b32.xlu0 %v770, 64
    %v773 = vpop.permute.xlu0 %772
    %v775 = vadd.f32 %v711, %v773
    %v776 = vtanh.pop %v775
    %v777 = vsub.f32 1.0, %v765
    %779 = vrot.lane.b32.xlu0 %v776, 96
    %v780 = vpop.permute.xlu0 %779
    %v782 = vmul.f32 %v777, %v780
    %v783 = vmul.f32 %v765, %v709
    %v784 = vadd.f32 %v782, %v783
    %s785 = sadd.s32 %s221, 5
    %v786 = vstv %s785
    %vm787 = vcmp.gt.s32.totalorder %v220, %v786
    %v788 = vsel %vm787, 1, 0
    %789 = vset.pattern.permute.xlu0 0
    %790 = vperm.xlu0 %789, %v788
    %v791 = vpop.permute.xlu0 %790
    %vm792 = vcmp.eq.s32.totalorder %v791, 1
    %v793 = vsel %vm792, %v784, 0.0
    %v794 = vpack.c.bf16 %v793, %v793
    %v796 = vunpack.c.l.b16 %v794
    %v797 = vpack.c.b16 %v796, %v796
    %798 = vrot.lane.b32.xlu0 %v797, 96
    %v799 = vpop.permute.xlu0 %798
    %s801 = scalar_lea.vmem [#allocation9], 20
    %802 = vst.msk [vmem:[%s801] sm:$0xf] %vm331, %v799
    %v803 = vsel %vm792, %v784, %v709
    %s804 = scalar_lea.vmem [#allocation2], 48
    %v805 = vld [vmem:[%s804] sm:$0xff]
    %v806 = vpack.c.bf16 %v803, %v803
    %808 = vrot.lane.b32.xlu0 %v806, 96
    %v809 = vpop.permute.xlu0 %808
    %v811 = vsel %vm128, %v809, 0
    %813 = vmatprep.subr.bf16.mxu0 0
    %814 = vmatpush1.bf16.msra.mxu0 %v239
    %815 = vmatprep.subr.bf16.mxu0 0
    %816 = vmatpush1.bf16.msra.mxu0 %v240
    %817 = vmatprep.subr.bf16.mxu0 0
    %818 = vmatpush1.bf16.msra.mxu0 0
    %819 = vmatprep.subr.bf16.mxu0 0
    %820 = vmatpush1.bf16.msra.mxu0 0
    %821 = vmatprep.subr.bf16.mxu0 0
    %822 = vmatpush1.bf16.msra.mxu0 0
    %823 = vmatprep.subr.bf16.mxu0 0
    %824 = vmatpush1.bf16.msra.mxu0 0
    %825 = vmatprep.subr.bf16.mxu0 0
    %826 = vmatpush1.bf16.msra.mxu0 0
    %827 = vmatprep.subr.bf16.mxu0 0
    %828 = vmatpush1.bf16.msra.mxu0 0
    %829 = vmatprep.subr.bf16.mxu0 0
    %830 = vmatpush1.bf16.msra.mxu0 0
    %831 = vmatprep.subr.bf16.mxu0 0
    %832 = vmatpush1.bf16.msra.mxu0 0
    %833 = vmatprep.subr.bf16.mxu0 0
    %834 = vmatpush1.bf16.msra.mxu0 0
    %835 = vmatprep.subr.bf16.mxu0 0
    %836 = vmatpush1.bf16.msra.mxu0 0
    %837 = vmatprep.subr.bf16.mxu0 0
    %838 = vmatpush1.bf16.msra.mxu0 0
    %839 = vmatprep.subr.bf16.mxu0 0
    %840 = vmatpush1.bf16.msra.mxu0 0
    %841 = vmatprep.subr.bf16.mxu0 0
    %842 = vmatpush1.bf16.msra.mxu0 0
    %843 = vmatprep.subr.bf16.mxu0 0
    %844 = vmatpush1.bf16.msra.mxu0 0
    %845 = vmatprep.mubr.bf16.mxu0 0
    %846 = vmatmul.mubr.bf16.gmra.mrb[0].mxu0 %v811
    %v847 = vpop.f32.mrb[0].mxu0
    %v848 = vadd.f32 %v229, %v847
    %v849 = vpop.f32.mrb[0].mxu0
    %v850 = vpop.f32.mrb[0].mxu0
    %v851 = vpop.f32.mrb[0].mxu0
    %852 = vdwg.mxu0
    %v853 = vadd.f32 %v805, %v848
    %v854 = vxor.u32 %v853, 2147483648
    %v855 = vmul.f32 %v854, 1.442695
    %v856 = vpow.pop %v855
    %v857 = vadd.f32 %v856, 1.0
    %v858 = vrcp.pop %v857
    %v859 = vmul.f32 1.0, %v858
    %861 = vrot.lane.b32.xlu0 %v848, 64
    %v862 = vpop.permute.xlu0 %861
    %v864 = vmul.f32 %v859, %v862
    %866 = vrot.lane.b32.xlu0 %v864, 64
    %v867 = vpop.permute.xlu0 %866
    %v869 = vadd.f32 %v805, %v867
    %v870 = vtanh.pop %v869
    %v871 = vsub.f32 1.0, %v859
    %873 = vrot.lane.b32.xlu0 %v870, 96
    %v874 = vpop.permute.xlu0 %873
    %v876 = vmul.f32 %v871, %v874
    %v877 = vmul.f32 %v859, %v803
    %v878 = vadd.f32 %v876, %v877
    %s879 = sadd.s32 %s221, 6
    %v880 = vstv %s879
    %vm881 = vcmp.gt.s32.totalorder %v220, %v880
    %v882 = vsel %vm881, 1, 0
    %883 = vset.pattern.permute.xlu0 0
    %884 = vperm.xlu0 %883, %v882
    %v885 = vpop.permute.xlu0 %884
    %vm886 = vcmp.eq.s32.totalorder %v885, 1
    %v887 = vsel %vm886, %v878, 0.0
    %v888 = vpack.c.bf16 %v887, %v887
    %v890 = vunpack.c.l.b16 %v888
    %v891 = vpack.c.b16 %v890, %v890
    %892 = vrot.lane.b32.xlu0 %v891, 96
    %v893 = vpop.permute.xlu0 %892
    %s895 = scalar_lea.vmem [#allocation9], 24
    %896 = vst.msk [vmem:[%s895] sm:$0xf] %vm331, %v893
    %v897 = vsel %vm886, %v878, %v803
    %s898 = scalar_lea.vmem [#allocation2], 56
    %v899 = vld [vmem:[%s898] sm:$0xff]
    %v900 = vpack.c.bf16 %v897, %v897
    %902 = vrot.lane.b32.xlu0 %v900, 96
    %v903 = vpop.permute.xlu0 %902
    %v905 = vsel %vm128, %v903, 0
    %907 = vmatprep.subr.bf16.mxu0 0
    %908 = vmatpush1.bf16.msra.mxu0 %v239
    %909 = vmatprep.subr.bf16.mxu0 0
    %910 = vmatpush1.bf16.msra.mxu0 %v240
    %911 = vmatprep.subr.bf16.mxu0 0
    %912 = vmatpush1.bf16.msra.mxu0 0
    %913 = vmatprep.subr.bf16.mxu0 0
    %914 = vmatpush1.bf16.msra.mxu0 0
    %915 = vmatprep.subr.bf16.mxu0 0
    %916 = vmatpush1.bf16.msra.mxu0 0
    %917 = vmatprep.subr.bf16.mxu0 0
    %918 = vmatpush1.bf16.msra.mxu0 0
    %919 = vmatprep.subr.bf16.mxu0 0
    %920 = vmatpush1.bf16.msra.mxu0 0
    %921 = vmatprep.subr.bf16.mxu0 0
    %922 = vmatpush1.bf16.msra.mxu0 0
    %923 = vmatprep.subr.bf16.mxu0 0
    %924 = vmatpush1.bf16.msra.mxu0 0
    %925 = vmatprep.subr.bf16.mxu0 0
    %926 = vmatpush1.bf16.msra.mxu0 0
    %927 = vmatprep.subr.bf16.mxu0 0
    %928 = vmatpush1.bf16.msra.mxu0 0
    %929 = vmatprep.subr.bf16.mxu0 0
    %930 = vmatpush1.bf16.msra.mxu0 0
    %931 = vmatprep.subr.bf16.mxu0 0
    %932 = vmatpush1.bf16.msra.mxu0 0
    %933 = vmatprep.subr.bf16.mxu0 0
    %934 = vmatpush1.bf16.msra.mxu0 0
    %935 = vmatprep.subr.bf16.mxu0 0
    %936 = vmatpush1.bf16.msra.mxu0 0
    %937 = vmatprep.subr.bf16.mxu0 0
    %938 = vmatpush1.bf16.msra.mxu0 0
    %939 = vmatprep.mubr.bf16.mxu0 0
    %940 = vmatmul.mubr.bf16.gmra.mrb[0].mxu0 %v905
    %v941 = vpop.f32.mrb[0].mxu0
    %v942 = vadd.f32 %v229, %v941
    %v943 = vpop.f32.mrb[0].mxu0
    %v944 = vpop.f32.mrb[0].mxu0
    %v945 = vpop.f32.mrb[0].mxu0
    %946 = vdwg.mxu0
    %v947 = vadd.f32 %v899, %v942
    %v948 = vxor.u32 %v947, 2147483648
    %v949 = vmul.f32 %v948, 1.442695
    %v950 = vpow.pop %v949
    %v951 = vadd.f32 %v950, 1.0
    %v952 = vrcp.pop %v951
    %v953 = vmul.f32 1.0, %v952
    %955 = vrot.lane.b32.xlu0 %v942, 64
    %v956 = vpop.permute.xlu0 %955
    %v958 = vmul.f32 %v953, %v956
    %960 = vrot.lane.b32.xlu0 %v958, 64
    %v961 = vpop.permute.xlu0 %960
    %v963 = vadd.f32 %v899, %v961
    %v964 = vtanh.pop %v963
    %v965 = vsub.f32 1.0, %v953
    %967 = vrot.lane.b32.xlu0 %v964, 96
    %v968 = vpop.permute.xlu0 %967
    %v970 = vmul.f32 %v965, %v968
    %v971 = vmul.f32 %v953, %v897
    %v972 = vadd.f32 %v970, %v971
    %s973 = sadd.s32 %s221, 7
    %v974 = vstv %s973
    %vm975 = vcmp.gt.s32.totalorder %v220, %v974
    %v976 = vsel %vm975, 1, 0
    %977 = vset.pattern.permute.xlu0 0
    %978 = vperm.xlu0 %977, %v976
    %v979 = vpop.permute.xlu0 %978
    %vm980 = vcmp.eq.s32.totalorder %v979, 1
    %v981 = vsel %vm980, %v972, 0.0
    %v982 = vpack.c.bf16 %v981, %v981
    %v984 = vunpack.c.l.b16 %v982
    %v985 = vpack.c.b16 %v984, %v984
    %986 = vrot.lane.b32.xlu0 %v985, 96
    %v987 = vpop.permute.xlu0 %986
    %s989 = scalar_lea.vmem [#allocation9], 28
    %990 = vst.msk [vmem:[%s989] sm:$0xf] %vm331, %v987
    %v991 = vsel %vm980, %v972, %v897
    %993 = vrot.lane.b32.xlu0 %v991, 96
    %v994 = vpop.permute.xlu0 %993
    %996 = vst.msk [vmem:[#allocation10] sm:$0xff] %vm128, %v994
    // Predicated region
    $region46: #{tpu_custom_call.1} parent=1 // pred_check
      _
    $region47: #{tpu_custom_call.1} parent=1 // pred_check_branch
      %998 = sbr.rel (0) target = $region49
    $region48: #{tpu_custom_call.1} parent=1 // pred_region
      %s1000 = ssub.s32 512, 512
      %1001 = vsyncadd [#allocation5], %s1000
      %s1002 = sshll.u32 [#allocation9], 4
      %s1003 = int_to_ptr.vmem [resolvable:$true] %s1002
      %1008 = dma.vmem_to_hbm [thread:$0]  %s1003, 512, %s7, [#allocation5], 64, 64, 4
    $region49: #{tpu_custom_call.1} parent=1 // pred_fallthru
      _
    // Predicated region
    $region50: #{tpu_custom_call.1} parent=1 // pred_check
      _
    $region51: #{tpu_custom_call.1} parent=1 // pred_check_branch
      %1010 = sbr.rel (0) target = $region53
    $region52: #{tpu_custom_call.1} parent=1 // pred_region
      %s1012 = ssub.s32 128, 128
      %1013 = vsyncadd [#allocation11], %s1012
      %s1015 = sshll.u32 [#allocation10], 4
      %s1016 = int_to_ptr.vmem [resolvable:$true] %s1015
      %1018 = dma.vmem_to_hbm [thread:$0]  %s1016, 128, %s8, [#allocation11]
    $region53: #{tpu_custom_call.1} parent=1 // pred_fallthru
      _
    // Predicated region
    $region54: #{tpu_custom_call.1} parent=1 // pred_check
      _
    $region55: #{tpu_custom_call.1} parent=1 // pred_check_branch
      %1020 = sbr.rel (0) target = $region57
    $region56: #{tpu_custom_call.1} parent=1 // pred_region
      %1021 = dma.done [#allocation5], 512
    $region57: #{tpu_custom_call.1} parent=1 // pred_fallthru
      _
    // Predicated region
    $region58: #{tpu_custom_call.1} parent=1 // pred_check
      _
    $region59: #{tpu_custom_call.1} parent=1 // pred_check_branch
      %1023 = sbr.rel (0) target = $region61
    $region60: #{tpu_custom_call.1} parent=1 // pred_region
      %1024 = dma.done [#allocation11], 128
    $region61: #{tpu_custom_call.1} parent=1 // pred_fallthru
      _
    %1025 = vsyncpa [#allocation4], 1
    %1026 = vsyncpa [#allocation7], 1
    %1027 = vsyncpa [#allocation5], 1
    %1028 = vsyncpa [#allocation11], 1

</llo_original>
